<compile_context>
chip_gen: v7x
topology: tpu7x:2x2x1
jax: 0.10.0
libtpu: 0.0.40
codegen_flags: <defaults>
</compile_context>

<pallas_src>
import functools

import jax
import jax.numpy as jnp
from jax.experimental import pallas as pl
from jax.experimental.pallas import tpu as pltpu


# ----------------------------------------------------------------------------
# BiLSTM recurrence kernel.  grid = (2,) over direction (fwd/bwd), "parallel".
# Per direction: one in-kernel fori_loop over T with W_hh / h / c resident.
# The input projection (x @ W_ih + b) has been hoisted to the glue, so `gates`
# already holds the per-timestep input contribution.
# ----------------------------------------------------------------------------
def bilstm_kernel(gates_ref, valid_ref, whh_ref, out_ref):
    d = pl.program_id(0)                  # 0 = forward, 1 = backward
    T, B, _ = gates_ref.shape             # gates: (T, B, 4H) for this direction
    H = whh_ref.shape[0]
    whh = whh_ref[...]                    # (H, 4H) resident for the whole recurrence

    def step(s, carry):
        h, c = carry
        t = jnp.where(d == 0, s, T - 1 - s)              # backward walks time reversed
        g = gates_ref[t] + jnp.dot(h, whh, preferred_element_type=jnp.float32)  # (B, 4H)
        v = valid_ref[t]                                  # (B, 1): 1.0 iff t < length[b]
        i_g = jax.nn.sigmoid(g[:, 0 * H:1 * H])
        f_g = jax.nn.sigmoid(g[:, 1 * H:2 * H])
        g_g = jnp.tanh(g[:, 2 * H:3 * H])
        o_g = jax.nn.sigmoid(g[:, 3 * H:4 * H])
        c_new = f_g * c + i_g * g_g
        h_new = o_g * jnp.tanh(c_new)
        out_ref[t] = v * h_new                            # padded positions -> 0
        h = v * h_new + (1.0 - v) * h                     # freeze state past sequence end
        c = v * c_new + (1.0 - v) * c
        return h, c

    init = (jnp.zeros((B, H), jnp.float32), jnp.zeros((B, H), jnp.float32))
    jax.lax.fori_loop(0, T, step, init, unroll=True)


def run_bilstm(gates, valid, whh):
    n_dir, T, B, G = gates.shape          # G = 4H
    H = whh.shape[1]
    return pl.pallas_call(
        bilstm_kernel,
        out_shape=jax.ShapeDtypeStruct((n_dir, T, B, H), jnp.float32),
        grid=(n_dir,),
        in_specs=[
            pl.BlockSpec((None, T, B, G), lambda d: (d, 0, 0, 0)),   # per-direction gates
            pl.BlockSpec((T, B, 1), lambda d: (0, 0, 0)),            # shared validity mask
            pl.BlockSpec((None, H, G), lambda d: (d, 0, 0)),         # per-direction W_hh
        ],
        out_specs=pl.BlockSpec((None, T, B, H), lambda d: (d, 0, 0, 0)),
        compiler_params=pltpu.CompilerParams(dimension_semantics=("parallel",)),
    )(gates, valid, whh)


# ----------------------------------------------------------------------------
# Fused self-attention + residual + multi_hops kernel.  grid = (B,), "parallel".
# Pair axis is flattened: row i*L + j  <->  (i, j).  All reshapes keep the minor
# (lane) dim fixed and split/merge the sublane dim on 8-row tile boundaries.
# ----------------------------------------------------------------------------
def attn_multihop_kernel(nhops, ctx_ref, kmask_ref, pmask_ref,
                         wcls_ref, bcls_ref, wfeat_ref, bf_ref, out_ref):
    x = ctx_ref[0]                        # (L, D2)  D2 = 2H
    L, D2 = x.shape
    km = kmask_ref[0]                     # (1, L)   key mask
    pmask = pmask_ref[0]                  # (L*L, 1) triu pair mask
    wcls = wcls_ref[...]                  # (4H, C)
    bcls = bcls_ref[...]                  # (1, C)
    wfeat = wfeat_ref[...]                # (4H+3C, 4H)  fused feature_linear weight
    bf = bf_ref[...]                      # (1, 4H)
    C = wcls.shape[1]

    # --- dot-product self attention over keys + residual (stays in VMEM) ---
    scores = jax.lax.dot_general(x, x, (((1,), (1,)), ((), ())),
                                 preferred_element_type=jnp.float32)   # (L, L)
    scores = jnp.where(km > 0.0, scores, -1e30)       # finite mask -> no NaN rows
    attn = jax.nn.softmax(scores, axis=-1)
    x = x + jnp.dot(attn, x, preferred_element_type=jnp.float32)       # (L, D2)

    # --- pair features [x_i ; x_j]  ->  (L*L, 4H), built with broadcasts ---
    xi = jnp.broadcast_to(x[:, None, :], (L, L, D2))
    xj = jnp.broadcast_to(x[None, :, :], (L, L, D2))
    feats = jnp.concatenate([xi, xj], axis=-1).reshape(L * L, 2 * D2)

    logits = jnp.dot(feats, wcls, preferred_element_type=jnp.float32) + bcls   # (L*L, C)

    for _ in range(nhops):
        probs = logits
        ml = (probs * pmask).reshape(L, L, C)          # masked logits, (i, j, c)
        la = jnp.max(ml, axis=0)                       # la[t] = max_i ml[i, t]   (L, C)
        lb = jnp.max(ml, axis=1)                       # lb[t] = max_j ml[t, j]   (L, C)
        m = jnp.maximum(la, lb)                        # (L, C)

        # log2[i*L+j] = concat(m[i], m[j])  ->  (L*L, 2C)
        mi = jnp.broadcast_to(m[:, None, :], (L, L, C))
        mj = jnp.broadcast_to(m[None, :, :], (L, L, C))
        log2 = jnp.concatenate([mi, mj], axis=-1).reshape(L * L, 2 * C)

        # fused feature_linear: cat([features, log2, probs]) @ W  (single matmul)
        new_in = jnp.concatenate([feats, log2, probs], axis=-1)       # (L*L, 4H+3C)
        feats = jnp.dot(new_in, wfeat, preferred_element_type=jnp.float32) + bf
        logits = jnp.dot(feats, wcls, preferred_element_type=jnp.float32) + bcls

    out_ref[0] = logits


def run_attn_multihops(context, key_mask, pair_mask, wcls, bcls, wfeat, bf, nhops):
    B, L, D2 = context.shape
    C = wcls.shape[1]
    LL = L * L
    return pl.pallas_call(
        functools.partial(attn_multihop_kernel, nhops),
        out_shape=jax.ShapeDtypeStruct((B, LL, C), jnp.float32),
        grid=(B,),
        in_specs=[
            pl.BlockSpec((1, L, D2), lambda b: (b, 0, 0)),
            pl.BlockSpec((1, 1, L), lambda b: (b, 0, 0)),
            pl.BlockSpec((1, LL, 1), lambda b: (b, 0, 0)),
            pl.BlockSpec(wcls.shape, lambda b: (0, 0)),
            pl.BlockSpec(bcls.shape, lambda b: (0, 0)),
            pl.BlockSpec(wfeat.shape, lambda b: (0, 0)),
            pl.BlockSpec(bf.shape, lambda b: (0, 0)),
        ],
        out_specs=pl.BlockSpec((1, LL, C), lambda b: (b, 0, 0)),
        compiler_params=pltpu.CompilerParams(dimension_semantics=("parallel",)),
    )(context, key_mask, pair_mask, wcls, bcls, wfeat, bf)


# ----------------------------------------------------------------------------
# Full forward (glue in JAX, hot paths in the Pallas kernels above).
# ----------------------------------------------------------------------------
def multi_infer_rnn_forward(params, tokens, lengths, mask, *, nhops, class_num):
    # --- _get_embedding (gather + mask; dropout = eval identity) ---
    gen_e = params["gen_emb"][tokens]                      # (B, T, 300)
    dom_e = params["domain_emb"][tokens]                   # (B, T, 100)
    emb = jnp.concatenate([gen_e, dom_e], axis=-1)         # args.emb != 'gen'
    emb = emb * mask[:, :, None].astype(jnp.float32)

    B, T, E = emb.shape
    L = int(lengths[0])                                    # max length (sorted descending)
    lens = jnp.asarray(lengths, jnp.int32)
    H = params["whh_f"].shape[0]
    H4 = 4 * H

    # --- _lstm_feature: hoisted input projection + Pallas recurrence ---
    xs = jnp.transpose(emb, (1, 0, 2))                     # (T, B, E) time-major
    valid = (jnp.arange(T, dtype=jnp.int32)[:, None] < lens[None, :]
             ).astype(jnp.float32)[:, :, None]             # (T, B, 1)

    # One big (T*B, E) x (E, 8H) matmul outside the sequential loop.
    wih_all = jnp.concatenate([params["wih_f"], params["wih_b"]], axis=1)   # (E, 8H)
    b_all = jnp.concatenate([params["b_f"], params["b_b"]], axis=1)         # (1, 8H)
    gates_all = jnp.einsum("tbe,eg->tbg", xs, wih_all,
                           preferred_element_type=jnp.float32) + b_all[None]
    gates = jnp.stack([gates_all[..., :H4], gates_all[..., H4:]], axis=0)   # (2, T, B, 4H)
    whh = jnp.stack([params["whh_f"], params["whh_b"]], axis=0)             # (2, H, 4H)

    out_dir = run_bilstm(gates, valid, whh)                # (2, T, B, H)
    context = jnp.concatenate([out_dir[0], out_dir[1]], axis=-1)            # (T, B, 2H)
    context = jnp.transpose(context, (1, 0, 2))[:, :L, :]                   # (B, L, 2H)

    # --- fused attention + residual + multi_hops ---
    mask_l = mask[:, :L].astype(jnp.float32)
    key_mask = mask_l.reshape(B, 1, L)
    mm = mask_l[:, :, None] * mask_l[:, None, :]           # (B, L, L)
    triu = (jnp.arange(L)[None, :, None] <= jnp.arange(L)[None, None, :]
            ).astype(jnp.float32)                          # keep j >= i
    pair_mask = (mm * triu).reshape(B, L * L, 1)

    # fused feature_linear weight: rows ordered [features | log2 | probs]
    wfeat = jnp.concatenate([params["wff"], params["wfl"], params["wfp"]], axis=0)

    logits_flat = run_attn_multihops(context, key_mask, pair_mask,
                                     params["wcls"], params["bcls"],
                                     wfeat, params["bf"], nhops)
    logits = logits_flat.reshape(B, L, L, class_num)
    return [logits]


# ----------------------------------------------------------------------------
# Deterministic parameter construction + example run.
# ----------------------------------------------------------------------------
def make_params(key, vocab, lstm_dim, class_num):
    E = 300 + 100
    H = lstm_dim
    H4 = 4 * lstm_dim        # pair-feature dim (2 * lstm_dim per direction, concatenated)
    C = class_num
    ks = jax.random.split(key, 16)
    u = lambda k, shape, s: jax.random.uniform(k, shape, jnp.float32, -s, s)
    klstm = 1.0 / jnp.sqrt(jnp.float32(H))
    params = {
        "gen_emb": jax.random.normal(ks[0], (vocab, 300), jnp.float32) * 0.1,
        "domain_emb": jax.random.normal(ks[1], (vocab, 100), jnp.float32) * 0.1,
        # forward-direction LSTM (weights stored transposed: (in, 4H))
        "wih_f": u(ks[2], (E, 4 * H), klstm),
        "whh_f": u(ks[3], (H, 4 * H), klstm),
        "b_f": u(ks[4], (1, 4 * H), klstm),
        # backward-direction LSTM
        "wih_b": u(ks[5], (E, 4 * H), klstm),
        "whh_b": u(ks[6], (H, 4 * H), klstm),
        "b_b": u(ks[7], (1, 4 * H), klstm),
        # cls_linear: (lstm_dim*4 -> class_num)
        "wcls": u(ks[8], (H4, C), 1.0 / jnp.sqrt(jnp.float32(H4))),
        "bcls": u(ks[9], (1, C), 1.0 / jnp.sqrt(jnp.float32(H4))),
        # feature_linear: (lstm_dim*4 + 3*class_num -> lstm_dim*4), weight.T row-split
        "wff": u(ks[10], (H4, H4), 1.0 / jnp.sqrt(jnp.float32(H4 + 3 * C))),
        "wfl": u(ks[11], (2 * C, H4), 1.0 / jnp.sqrt(jnp.float32(H4 + 3 * C))),
        "wfp": u(ks[12], (C, H4), 1.0 / jnp.sqrt(jnp.float32(H4 + 3 * C))),
        "bf": u(ks[13], (1, H4), 1.0 / jnp.sqrt(jnp.float32(H4 + 3 * C))),
    }
    return params


if __name__ == "__main__":
    # args: lstm_dim=32, class_num=4, nhops=2, emb='gen_domain' (concat path, 400-d input)
    B, T, VOCAB = 2, 8, 50
    LSTM_DIM, CLASS_NUM, NHOPS = 32, 4, 2
    lengths = [8, 6]                                   # sorted descending; lengths[0] == T

    key = jax.random.PRNGKey(0)
    kp, kt = jax.random.split(key)
    params = make_params(kp, VOCAB, LSTM_DIM, CLASS_NUM)

    sentence_tokens = jax.random.randint(kt, (B, T), 0, VOCAB, dtype=jnp.int32)
    mask = (jnp.arange(T, dtype=jnp.int32)[None, :]
            < jnp.asarray(lengths, jnp.int32)[:, None]).astype(jnp.float32)

    out = multi_infer_rnn_forward(params, sentence_tokens, lengths, mask,
                                  nhops=NHOPS, class_num=CLASS_NUM)
    out = jax.block_until_ready(out)
    logits = out[0]
    assert logits.shape == (B, lengths[0], lengths[0], CLASS_NUM), logits.shape
    assert bool(jnp.all(jnp.isfinite(logits)))
    print("KERNEL_OK")
</pallas_src>

<mosaic_0001>
module attributes {stable_mosaic.version = 11 : i64} {
  func.func @bilstm_kernel(%arg0: i32, %arg1: memref<1x8x2x128xf32, #tpu.memory_space<vmem>>, %arg2: memref<8x2x1xf32, #tpu.memory_space<vmem>>, %arg3: memref<1x32x128xf32, #tpu.memory_space<vmem>>, %arg4: memref<1x8x2x32xf32, #tpu.memory_space<vmem>>) attributes {dimension_semantics = [#tpu.dimension_semantics<parallel>], iteration_bounds = array<i64: 2>, scalar_prefetch = 0 : i64, scratch_operands = 0 : i64, tpu.core_type = #tpu.core_type<tc>, window_params = [{transform_indices = @transform_0, window_bounds = array<i64: 1, 8, 2, 128>}, {pipeline_mode = #tpu.pipeline_mode<synchronous>, transform_indices = @transform_1, window_bounds = array<i64: 8, 2, 1>}, {transform_indices = @transform_2, window_bounds = array<i64: 1, 32, 128>}, {transform_indices = @transform_3, window_bounds = array<i64: 1, 8, 2, 32>}]} {
    %c0 = arith.constant 0 : index
    %c0_0 = arith.constant 0 : index
    %c0_1 = arith.constant 0 : index
    %0 = vector.load %arg3[%c0, %c0_0, %c0_1] : memref<1x32x128xf32, #tpu.memory_space<vmem>>, vector<1x32x128xf32>
    %1 = vector.shape_cast %0 : vector<1x32x128xf32> to vector<32x128xf32>
    %cst = arith.constant 0.000000e+00 : f32
    %2 = vector.broadcast %cst : f32 to vector<2x32xf32>
    %cst_2 = arith.constant 0.000000e+00 : f32
    %3 = vector.broadcast %cst_2 : f32 to vector<2x32xf32>
    %c0_i32 = arith.constant 0 : i32
    %c0_i32_3 = arith.constant 0 : i32
    %4 = arith.cmpi eq, %arg0, %c0_i32_3 : i32
    %c7_i32 = arith.constant 7 : i32
    %5 = arith.subi %c7_i32, %c0_i32 : i32
    %6 = arith.select %4, %c0_i32, %5 : i32
    %c0_4 = arith.constant 0 : index
    %7 = arith.index_cast %6 : i32 to index
    %c0_5 = arith.constant 0 : index
    %c0_6 = arith.constant 0 : index
    %8 = vector.load %arg1[%c0_4, %7, %c0_5, %c0_6] : memref<1x8x2x128xf32, #tpu.memory_space<vmem>>, vector<1x1x2x128xf32>
    %9 = vector.shape_cast %8 : vector<1x1x2x128xf32> to vector<2x128xf32>
    %cst_7 = arith.constant dense<0.000000e+00> : vector<2x128xf32>
    %10 = tpu.matmul %2, %1, %cst_7 {dimension_numbers = #tpu.dot_dimension_numbers<[1], [0], [0], [1], [0, 0, 1, 1], [], []>} : vector<2x32xf32>, vector<32x128xf32>, vector<2x128xf32> -> vector<2x128xf32>
    %11 = arith.addf %9, %10 : vector<2x128xf32>
    %12 = arith.index_cast %6 : i32 to index
    %c0_8 = arith.constant 0 : index
    %c0_9 = arith.constant 0 : index
    %13 = vector.load %arg2[%12, %c0_8, %c0_9] : memref<8x2x1xf32, #tpu.memory_space<vmem>>, vector<1x2x1xf32>
    %14 = vector.shape_cast %13 : vector<1x2x1xf32> to vector<2x1xf32>
    %15 = vector.extract_strided_slice %11 {offsets = [0, 0], sizes = [2, 32], strides = [1, 1]} : vector<2x128xf32> to vector<2x32xf32>
    %16 = arith.negf %15 : vector<2x32xf32>
    %17 = math.exp %16 : vector<2x32xf32>
    %cst_10 = arith.constant 1.000000e+00 : f32
    %18 = vector.broadcast %cst_10 : f32 to vector<2x32xf32>
    %19 = arith.addf %18, %17 : vector<2x32xf32>
    %20 = arith.divf %18, %19 : vector<2x32xf32>
    %21 = vector.extract_strided_slice %11 {offsets = [0, 32], sizes = [2, 32], strides = [1, 1]} : vector<2x128xf32> to vector<2x32xf32>
    %22 = arith.negf %21 : vector<2x32xf32>
    %23 = math.exp %22 : vector<2x32xf32>
    %cst_11 = arith.constant 1.000000e+00 : f32
    %24 = vector.broadcast %cst_11 : f32 to vector<2x32xf32>
    %25 = arith.addf %24, %23 : vector<2x32xf32>
    %26 = arith.divf %24, %25 : vector<2x32xf32>
    %27 = vector.extract_strided_slice %11 {offsets = [0, 64], sizes = [2, 32], strides = [1, 1]} : vector<2x128xf32> to vector<2x32xf32>
    %28 = math.tanh %27 : vector<2x32xf32>
    %29 = vector.extract_strided_slice %11 {offsets = [0, 96], sizes = [2, 32], strides = [1, 1]} : vector<2x128xf32> to vector<2x32xf32>
    %30 = arith.negf %29 : vector<2x32xf32>
    %31 = math.exp %30 : vector<2x32xf32>
    %cst_12 = arith.constant 1.000000e+00 : f32
    %32 = vector.broadcast %cst_12 : f32 to vector<2x32xf32>
    %33 = arith.addf %32, %31 : vector<2x32xf32>
    %34 = arith.divf %32, %33 : vector<2x32xf32>
    %35 = arith.mulf %26, %3 : vector<2x32xf32>
    %36 = arith.mulf %20, %28 : vector<2x32xf32>
    %37 = arith.addf %35, %36 : vector<2x32xf32>
    %38 = math.tanh %37 : vector<2x32xf32>
    %39 = arith.mulf %34, %38 : vector<2x32xf32>
    %40 = vector.broadcast %14 : vector<2x1xf32> to vector<2x32xf32>
    %41 = arith.mulf %40, %39 : vector<2x32xf32>
    %c0_13 = arith.constant 0 : index
    %42 = arith.index_cast %6 : i32 to index
    %c0_14 = arith.constant 0 : index
    %c0_15 = arith.constant 0 : index
    %43 = vector.load %arg4[%c0_13, %42, %c0_14, %c0_15] : memref<1x8x2x32xf32, #tpu.memory_space<vmem>>, vector<1x1x2x32xf32>
    %44 = vector.shape_cast %43 : vector<1x1x2x32xf32> to vector<2x32xf32>
    %45 = vector.shape_cast %41 : vector<2x32xf32> to vector<1x1x2x32xf32>
    tpu.vector_store %arg4[%c0_13, %42, %c0_14, %c0_15], %45 {strides = array<i32>} : memref<1x8x2x32xf32, #tpu.memory_space<vmem>>, vector<1x1x2x32xf32>,
    %46 = vector.broadcast %14 : vector<2x1xf32> to vector<2x32xf32>
    %47 = arith.mulf %46, %39 : vector<2x32xf32>
    %cst_16 = arith.constant 1.000000e+00 : f32
    %48 = vector.broadcast %cst_16 : f32 to vector<2x1xf32>
    %49 = arith.subf %48, %14 : vector<2x1xf32>
    %50 = vector.broadcast %49 : vector<2x1xf32> to vector<2x32xf32>
    %51 = arith.mulf %50, %2 : vector<2x32xf32>
    %52 = arith.addf %47, %51 : vector<2x32xf32>
    %53 = vector.broadcast %14 : vector<2x1xf32> to vector<2x32xf32>
    %54 = arith.mulf %53, %37 : vector<2x32xf32>
    %cst_17 = arith.constant 1.000000e+00 : f32
    %55 = vector.broadcast %cst_17 : f32 to vector<2x1xf32>
    %56 = arith.subf %55, %14 : vector<2x1xf32>
    %57 = vector.broadcast %56 : vector<2x1xf32> to vector<2x32xf32>
    %58 = arith.mulf %57, %3 : vector<2x32xf32>
    %59 = arith.addf %54, %58 : vector<2x32xf32>
    %c1_i32 = arith.constant 1 : i32
    %c0_i32_18 = arith.constant 0 : i32
    %60 = arith.cmpi eq, %arg0, %c0_i32_18 : i32
    %c7_i32_19 = arith.constant 7 : i32
    %61 = arith.subi %c7_i32_19, %c1_i32 : i32
    %62 = arith.select %60, %c1_i32, %61 : i32
    %c0_20 = arith.constant 0 : index
    %63 = arith.index_cast %62 : i32 to index
    %c0_21 = arith.constant 0 : index
    %c0_22 = arith.constant 0 : index
    %64 = vector.load %arg1[%c0_20, %63, %c0_21, %c0_22] : memref<1x8x2x128xf32, #tpu.memory_space<vmem>>, vector<1x1x2x128xf32>
    %65 = vector.shape_cast %64 : vector<1x1x2x128xf32> to vector<2x128xf32>
    %cst_23 = arith.constant dense<0.000000e+00> : vector<2x128xf32>
    %66 = tpu.matmul %52, %1, %cst_23 {dimension_numbers = #tpu.dot_dimension_numbers<[1], [0], [0], [1], [0, 0, 1, 1], [], []>} : vector<2x32xf32>, vector<32x128xf32>, vector<2x128xf32> -> vector<2x128xf32>
    %67 = arith.addf %65, %66 : vector<2x128xf32>
    %68 = arith.index_cast %62 : i32 to index
    %c0_24 = arith.constant 0 : index
    %c0_25 = arith.constant 0 : index
    %69 = vector.load %arg2[%68, %c0_24, %c0_25] : memref<8x2x1xf32, #tpu.memory_space<vmem>>, vector<1x2x1xf32>
    %70 = vector.shape_cast %69 : vector<1x2x1xf32> to vector<2x1xf32>
    %71 = vector.extract_strided_slice %67 {offsets = [0, 0], sizes = [2, 32], strides = [1, 1]} : vector<2x128xf32> to vector<2x32xf32>
    %72 = arith.negf %71 : vector<2x32xf32>
    %73 = math.exp %72 : vector<2x32xf32>
    %cst_26 = arith.constant 1.000000e+00 : f32
    %74 = vector.broadcast %cst_26 : f32 to vector<2x32xf32>
    %75 = arith.addf %74, %73 : vector<2x32xf32>
    %76 = arith.divf %74, %75 : vector<2x32xf32>
    %77 = vector.extract_strided_slice %67 {offsets = [0, 32], sizes = [2, 32], strides = [1, 1]} : vector<2x128xf32> to vector<2x32xf32>
    %78 = arith.negf %77 : vector<2x32xf32>
    %79 = math.exp %78 : vector<2x32xf32>
    %cst_27 = arith.constant 1.000000e+00 : f32
    %80 = vector.broadcast %cst_27 : f32 to vector<2x32xf32>
    %81 = arith.addf %80, %79 : vector<2x32xf32>
    %82 = arith.divf %80, %81 : vector<2x32xf32>
    %83 = vector.extract_strided_slice %67 {offsets = [0, 64], sizes = [2, 32], strides = [1, 1]} : vector<2x128xf32> to vector<2x32xf32>
    %84 = math.tanh %83 : vector<2x32xf32>
    %85 = vector.extract_strided_slice %67 {offsets = [0, 96], sizes = [2, 32], strides = [1, 1]} : vector<2x128xf32> to vector<2x32xf32>
    %86 = arith.negf %85 : vector<2x32xf32>
    %87 = math.exp %86 : vector<2x32xf32>
    %cst_28 = arith.constant 1.000000e+00 : f32
    %88 = vector.broadcast %cst_28 : f32 to vector<2x32xf32>
    %89 = arith.addf %88, %87 : vector<2x32xf32>
    %90 = arith.divf %88, %89 : vector<2x32xf32>
    %91 = arith.mulf %82, %59 : vector<2x32xf32>
    %92 = arith.mulf %76, %84 : vector<2x32xf32>
    %93 = arith.addf %91, %92 : vector<2x32xf32>
    %94 = math.tanh %93 : vector<2x32xf32>
    %95 = arith.mulf %90, %94 : vector<2x32xf32>
    %96 = vector.broadcast %70 : vector<2x1xf32> to vector<2x32xf32>
    %97 = arith.mulf %96, %95 : vector<2x32xf32>
    %c0_29 = arith.constant 0 : index
    %98 = arith.index_cast %62 : i32 to index
    %c0_30 = arith.constant 0 : index
    %c0_31 = arith.constant 0 : index
    %99 = vector.load %arg4[%c0_29, %98, %c0_30, %c0_31] : memref<1x8x2x32xf32, #tpu.memory_space<vmem>>, vector<1x1x2x32xf32>
    %100 = vector.shape_cast %99 : vector<1x1x2x32xf32> to vector<2x32xf32>
    %101 = vector.shape_cast %97 : vector<2x32xf32> to vector<1x1x2x32xf32>
    tpu.vector_store %arg4[%c0_29, %98, %c0_30, %c0_31], %101 {strides = array<i32>} : memref<1x8x2x32xf32, #tpu.memory_space<vmem>>, vector<1x1x2x32xf32>,
    %102 = vector.broadcast %70 : vector<2x1xf32> to vector<2x32xf32>
    %103 = arith.mulf %102, %95 : vector<2x32xf32>
    %cst_32 = arith.constant 1.000000e+00 : f32
    %104 = vector.broadcast %cst_32 : f32 to vector<2x1xf32>
    %105 = arith.subf %104, %70 : vector<2x1xf32>
    %106 = vector.broadcast %105 : vector<2x1xf32> to vector<2x32xf32>
    %107 = arith.mulf %106, %52 : vector<2x32xf32>
    %108 = arith.addf %103, %107 : vector<2x32xf32>
    %109 = vector.broadcast %70 : vector<2x1xf32> to vector<2x32xf32>
    %110 = arith.mulf %109, %93 : vector<2x32xf32>
    %cst_33 = arith.constant 1.000000e+00 : f32
    %111 = vector.broadcast %cst_33 : f32 to vector<2x1xf32>
    %112 = arith.subf %111, %70 : vector<2x1xf32>
    %113 = vector.broadcast %112 : vector<2x1xf32> to vector<2x32xf32>
    %114 = arith.mulf %113, %59 : vector<2x32xf32>
    %115 = arith.addf %110, %114 : vector<2x32xf32>
    %c2_i32 = arith.constant 2 : i32
    %c0_i32_34 = arith.constant 0 : i32
    %116 = arith.cmpi eq, %arg0, %c0_i32_34 : i32
    %c7_i32_35 = arith.constant 7 : i32
    %117 = arith.subi %c7_i32_35, %c2_i32 : i32
    %118 = arith.select %116, %c2_i32, %117 : i32
    %c0_36 = arith.constant 0 : index
    %119 = arith.index_cast %118 : i32 to index
    %c0_37 = arith.constant 0 : index
    %c0_38 = arith.constant 0 : index
    %120 = vector.load %arg1[%c0_36, %119, %c0_37, %c0_38] : memref<1x8x2x128xf32, #tpu.memory_space<vmem>>, vector<1x1x2x128xf32>
    %121 = vector.shape_cast %120 : vector<1x1x2x128xf32> to vector<2x128xf32>
    %cst_39 = arith.constant dense<0.000000e+00> : vector<2x128xf32>
    %122 = tpu.matmul %108, %1, %cst_39 {dimension_numbers = #tpu.dot_dimension_numbers<[1], [0], [0], [1], [0, 0, 1, 1], [], []>} : vector<2x32xf32>, vector<32x128xf32>, vector<2x128xf32> -> vector<2x128xf32>
    %123 = arith.addf %121, %122 : vector<2x128xf32>
    %124 = arith.index_cast %118 : i32 to index
    %c0_40 = arith.constant 0 : index
    %c0_41 = arith.constant 0 : index
    %125 = vector.load %arg2[%124, %c0_40, %c0_41] : memref<8x2x1xf32, #tpu.memory_space<vmem>>, vector<1x2x1xf32>
    %126 = vector.shape_cast %125 : vector<1x2x1xf32> to vector<2x1xf32>
    %127 = vector.extract_strided_slice %123 {offsets = [0, 0], sizes = [2, 32], strides = [1, 1]} : vector<2x128xf32> to vector<2x32xf32>
    %128 = arith.negf %127 : vector<2x32xf32>
    %129 = math.exp %128 : vector<2x32xf32>
    %cst_42 = arith.constant 1.000000e+00 : f32
    %130 = vector.broadcast %cst_42 : f32 to vector<2x32xf32>
    %131 = arith.addf %130, %129 : vector<2x32xf32>
    %132 = arith.divf %130, %131 : vector<2x32xf32>
    %133 = vector.extract_strided_slice %123 {offsets = [0, 32], sizes = [2, 32], strides = [1, 1]} : vector<2x128xf32> to vector<2x32xf32>
    %134 = arith.negf %133 : vector<2x32xf32>
    %135 = math.exp %134 : vector<2x32xf32>
    %cst_43 = arith.constant 1.000000e+00 : f32
    %136 = vector.broadcast %cst_43 : f32 to vector<2x32xf32>
    %137 = arith.addf %136, %135 : vector<2x32xf32>
    %138 = arith.divf %136, %137 : vector<2x32xf32>
    %139 = vector.extract_strided_slice %123 {offsets = [0, 64], sizes = [2, 32], strides = [1, 1]} : vector<2x128xf32> to vector<2x32xf32>
    %140 = math.tanh %139 : vector<2x32xf32>
    %141 = vector.extract_strided_slice %123 {offsets = [0, 96], sizes = [2, 32], strides = [1, 1]} : vector<2x128xf32> to vector<2x32xf32>
    %142 = arith.negf %141 : vector<2x32xf32>
    %143 = math.exp %142 : vector<2x32xf32>
    %cst_44 = arith.constant 1.000000e+00 : f32
    %144 = vector.broadcast %cst_44 : f32 to vector<2x32xf32>
    %145 = arith.addf %144, %143 : vector<2x32xf32>
    %146 = arith.divf %144, %145 : vector<2x32xf32>
    %147 = arith.mulf %138, %115 : vector<2x32xf32>
    %148 = arith.mulf %132, %140 : vector<2x32xf32>
    %149 = arith.addf %147, %148 : vector<2x32xf32>
    %150 = math.tanh %149 : vector<2x32xf32>
    %151 = arith.mulf %146, %150 : vector<2x32xf32>
    %152 = vector.broadcast %126 : vector<2x1xf32> to vector<2x32xf32>
    %153 = arith.mulf %152, %151 : vector<2x32xf32>
    %c0_45 = arith.constant 0 : index
    %154 = arith.index_cast %118 : i32 to index
    %c0_46 = arith.constant 0 : index
    %c0_47 = arith.constant 0 : index
    %155 = vector.load %arg4[%c0_45, %154, %c0_46, %c0_47] : memref<1x8x2x32xf32, #tpu.memory_space<vmem>>, vector<1x1x2x32xf32>
    %156 = vector.shape_cast %155 : vector<1x1x2x32xf32> to vector<2x32xf32>
    %157 = vector.shape_cast %153 : vector<2x32xf32> to vector<1x1x2x32xf32>
    tpu.vector_store %arg4[%c0_45, %154, %c0_46, %c0_47], %157 {strides = array<i32>} : memref<1x8x2x32xf32, #tpu.memory_space<vmem>>, vector<1x1x2x32xf32>,
    %158 = vector.broadcast %126 : vector<2x1xf32> to vector<2x32xf32>
    %159 = arith.mulf %158, %151 : vector<2x32xf32>
    %cst_48 = arith.constant 1.000000e+00 : f32
    %160 = vector.broadcast %cst_48 : f32 to vector<2x1xf32>
    %161 = arith.subf %160, %126 : vector<2x1xf32>
    %162 = vector.broadcast %161 : vector<2x1xf32> to vector<2x32xf32>
    %163 = arith.mulf %162, %108 : vector<2x32xf32>
    %164 = arith.addf %159, %163 : vector<2x32xf32>
    %165 = vector.broadcast %126 : vector<2x1xf32> to vector<2x32xf32>
    %166 = arith.mulf %165, %149 : vector<2x32xf32>
    %cst_49 = arith.constant 1.000000e+00 : f32
    %167 = vector.broadcast %cst_49 : f32 to vector<2x1xf32>
    %168 = arith.subf %167, %126 : vector<2x1xf32>
    %169 = vector.broadcast %168 : vector<2x1xf32> to vector<2x32xf32>
    %170 = arith.mulf %169, %115 : vector<2x32xf32>
    %171 = arith.addf %166, %170 : vector<2x32xf32>
    %c3_i32 = arith.constant 3 : i32
    %c0_i32_50 = arith.constant 0 : i32
    %172 = arith.cmpi eq, %arg0, %c0_i32_50 : i32
    %c7_i32_51 = arith.constant 7 : i32
    %173 = arith.subi %c7_i32_51, %c3_i32 : i32
    %174 = arith.select %172, %c3_i32, %173 : i32
    %c0_52 = arith.constant 0 : index
    %175 = arith.index_cast %174 : i32 to index
    %c0_53 = arith.constant 0 : index
    %c0_54 = arith.constant 0 : index
    %176 = vector.load %arg1[%c0_52, %175, %c0_53, %c0_54] : memref<1x8x2x128xf32, #tpu.memory_space<vmem>>, vector<1x1x2x128xf32>
    %177 = vector.shape_cast %176 : vector<1x1x2x128xf32> to vector<2x128xf32>
    %cst_55 = arith.constant dense<0.000000e+00> : vector<2x128xf32>
    %178 = tpu.matmul %164, %1, %cst_55 {dimension_numbers = #tpu.dot_dimension_numbers<[1], [0], [0], [1], [0, 0, 1, 1], [], []>} : vector<2x32xf32>, vector<32x128xf32>, vector<2x128xf32> -> vector<2x128xf32>
    %179 = arith.addf %177, %178 : vector<2x128xf32>
    %180 = arith.index_cast %174 : i32 to index
    %c0_56 = arith.constant 0 : index
    %c0_57 = arith.constant 0 : index
    %181 = vector.load %arg2[%180, %c0_56, %c0_57] : memref<8x2x1xf32, #tpu.memory_space<vmem>>, vector<1x2x1xf32>
    %182 = vector.shape_cast %181 : vector<1x2x1xf32> to vector<2x1xf32>
    %183 = vector.extract_strided_slice %179 {offsets = [0, 0], sizes = [2, 32], strides = [1, 1]} : vector<2x128xf32> to vector<2x32xf32>
    %184 = arith.negf %183 : vector<2x32xf32>
    %185 = math.exp %184 : vector<2x32xf32>
    %cst_58 = arith.constant 1.000000e+00 : f32
    %186 = vector.broadcast %cst_58 : f32 to vector<2x32xf32>
    %187 = arith.addf %186, %185 : vector<2x32xf32>
    %188 = arith.divf %186, %187 : vector<2x32xf32>
    %189 = vector.extract_strided_slice %179 {offsets = [0, 32], sizes = [2, 32], strides = [1, 1]} : vector<2x128xf32> to vector<2x32xf32>
    %190 = arith.negf %189 : vector<2x32xf32>
    %191 = math.exp %190 : vector<2x32xf32>
    %cst_59 = arith.constant 1.000000e+00 : f32
    %192 = vector.broadcast %cst_59 : f32 to vector<2x32xf32>
    %193 = arith.addf %192, %191 : vector<2x32xf32>
    %194 = arith.divf %192, %193 : vector<2x32xf32>
    %195 = vector.extract_strided_slice %179 {offsets = [0, 64], sizes = [2, 32], strides = [1, 1]} : vector<2x128xf32> to vector<2x32xf32>
    %196 = math.tanh %195 : vector<2x32xf32>
    %197 = vector.extract_strided_slice %179 {offsets = [0, 96], sizes = [2, 32], strides = [1, 1]} : vector<2x128xf32> to vector<2x32xf32>
    %198 = arith.negf %197 : vector<2x32xf32>
    %199 = math.exp %198 : vector<2x32xf32>
    %cst_60 = arith.constant 1.000000e+00 : f32
    %200 = vector.broadcast %cst_60 : f32 to vector<2x32xf32>
    %201 = arith.addf %200, %199 : vector<2x32xf32>
    %202 = arith.divf %200, %201 : vector<2x32xf32>
    %203 = arith.mulf %194, %171 : vector<2x32xf32>
    %204 = arith.mulf %188, %196 : vector<2x32xf32>
    %205 = arith.addf %203, %204 : vector<2x32xf32>
    %206 = math.tanh %205 : vector<2x32xf32>
    %207 = arith.mulf %202, %206 : vector<2x32xf32>
    %208 = vector.broadcast %182 : vector<2x1xf32> to vector<2x32xf32>
    %209 = arith.mulf %208, %207 : vector<2x32xf32>
    %c0_61 = arith.constant 0 : index
    %210 = arith.index_cast %174 : i32 to index
    %c0_62 = arith.constant 0 : index
    %c0_63 = arith.constant 0 : index
    %211 = vector.load %arg4[%c0_61, %210, %c0_62, %c0_63] : memref<1x8x2x32xf32, #tpu.memory_space<vmem>>, vector<1x1x2x32xf32>
    %212 = vector.shape_cast %211 : vector<1x1x2x32xf32> to vector<2x32xf32>
    %213 = vector.shape_cast %209 : vector<2x32xf32> to vector<1x1x2x32xf32>
    tpu.vector_store %arg4[%c0_61, %210, %c0_62, %c0_63], %213 {strides = array<i32>} : memref<1x8x2x32xf32, #tpu.memory_space<vmem>>, vector<1x1x2x32xf32>,
    %214 = vector.broadcast %182 : vector<2x1xf32> to vector<2x32xf32>
    %215 = arith.mulf %214, %207 : vector<2x32xf32>
    %cst_64 = arith.constant 1.000000e+00 : f32
    %216 = vector.broadcast %cst_64 : f32 to vector<2x1xf32>
    %217 = arith.subf %216, %182 : vector<2x1xf32>
    %218 = vector.broadcast %217 : vector<2x1xf32> to vector<2x32xf32>
    %219 = arith.mulf %218, %164 : vector<2x32xf32>
    %220 = arith.addf %215, %219 : vector<2x32xf32>
    %221 = vector.broadcast %182 : vector<2x1xf32> to vector<2x32xf32>
    %222 = arith.mulf %221, %205 : vector<2x32xf32>
    %cst_65 = arith.constant 1.000000e+00 : f32
    %223 = vector.broadcast %cst_65 : f32 to vector<2x1xf32>
    %224 = arith.subf %223, %182 : vector<2x1xf32>
    %225 = vector.broadcast %224 : vector<2x1xf32> to vector<2x32xf32>
    %226 = arith.mulf %225, %171 : vector<2x32xf32>
    %227 = arith.addf %222, %226 : vector<2x32xf32>
    %c4_i32 = arith.constant 4 : i32
    %c0_i32_66 = arith.constant 0 : i32
    %228 = arith.cmpi eq, %arg0, %c0_i32_66 : i32
    %c7_i32_67 = arith.constant 7 : i32
    %229 = arith.subi %c7_i32_67, %c4_i32 : i32
    %230 = arith.select %228, %c4_i32, %229 : i32
    %c0_68 = arith.constant 0 : index
    %231 = arith.index_cast %230 : i32 to index
    %c0_69 = arith.constant 0 : index
    %c0_70 = arith.constant 0 : index
    %232 = vector.load %arg1[%c0_68, %231, %c0_69, %c0_70] : memref<1x8x2x128xf32, #tpu.memory_space<vmem>>, vector<1x1x2x128xf32>
    %233 = vector.shape_cast %232 : vector<1x1x2x128xf32> to vector<2x128xf32>
    %cst_71 = arith.constant dense<0.000000e+00> : vector<2x128xf32>
    %234 = tpu.matmul %220, %1, %cst_71 {dimension_numbers = #tpu.dot_dimension_numbers<[1], [0], [0], [1], [0, 0, 1, 1], [], []>} : vector<2x32xf32>, vector<32x128xf32>, vector<2x128xf32> -> vector<2x128xf32>
    %235 = arith.addf %233, %234 : vector<2x128xf32>
    %236 = arith.index_cast %230 : i32 to index
    %c0_72 = arith.constant 0 : index
    %c0_73 = arith.constant 0 : index
    %237 = vector.load %arg2[%236, %c0_72, %c0_73] : memref<8x2x1xf32, #tpu.memory_space<vmem>>, vector<1x2x1xf32>
    %238 = vector.shape_cast %237 : vector<1x2x1xf32> to vector<2x1xf32>
    %239 = vector.extract_strided_slice %235 {offsets = [0, 0], sizes = [2, 32], strides = [1, 1]} : vector<2x128xf32> to vector<2x32xf32>
    %240 = arith.negf %239 : vector<2x32xf32>
    %241 = math.exp %240 : vector<2x32xf32>
    %cst_74 = arith.constant 1.000000e+00 : f32
    %242 = vector.broadcast %cst_74 : f32 to vector<2x32xf32>
    %243 = arith.addf %242, %241 : vector<2x32xf32>
    %244 = arith.divf %242, %243 : vector<2x32xf32>
    %245 = vector.extract_strided_slice %235 {offsets = [0, 32], sizes = [2, 32], strides = [1, 1]} : vector<2x128xf32> to vector<2x32xf32>
    %246 = arith.negf %245 : vector<2x32xf32>
    %247 = math.exp %246 : vector<2x32xf32>
    %cst_75 = arith.constant 1.000000e+00 : f32
    %248 = vector.broadcast %cst_75 : f32 to vector<2x32xf32>
    %249 = arith.addf %248, %247 : vector<2x32xf32>
    %250 = arith.divf %248, %249 : vector<2x32xf32>
    %251 = vector.extract_strided_slice %235 {offsets = [0, 64], sizes = [2, 32], strides = [1, 1]} : vector<2x128xf32> to vector<2x32xf32>
    %252 = math.tanh %251 : vector<2x32xf32>
    %253 = vector.extract_strided_slice %235 {offsets = [0, 96], sizes = [2, 32], strides = [1, 1]} : vector<2x128xf32> to vector<2x32xf32>
    %254 = arith.negf %253 : vector<2x32xf32>
    %255 = math.exp %254 : vector<2x32xf32>
    %cst_76 = arith.constant 1.000000e+00 : f32
    %256 = vector.broadcast %cst_76 : f32 to vector<2x32xf32>
    %257 = arith.addf %256, %255 : vector<2x32xf32>
    %258 = arith.divf %256, %257 : vector<2x32xf32>
    %259 = arith.mulf %250, %227 : vector<2x32xf32>
    %260 = arith.mulf %244, %252 : vector<2x32xf32>
    %261 = arith.addf %259, %260 : vector<2x32xf32>
    %262 = math.tanh %261 : vector<2x32xf32>
    %263 = arith.mulf %258, %262 : vector<2x32xf32>
    %264 = vector.broadcast %238 : vector<2x1xf32> to vector<2x32xf32>
    %265 = arith.mulf %264, %263 : vector<2x32xf32>
    %c0_77 = arith.constant 0 : index
    %266 = arith.index_cast %230 : i32 to index
    %c0_78 = arith.constant 0 : index
    %c0_79 = arith.constant 0 : index
    %267 = vector.load %arg4[%c0_77, %266, %c0_78, %c0_79] : memref<1x8x2x32xf32, #tpu.memory_space<vmem>>, vector<1x1x2x32xf32>
    %268 = vector.shape_cast %267 : vector<1x1x2x32xf32> to vector<2x32xf32>
    %269 = vector.shape_cast %265 : vector<2x32xf32> to vector<1x1x2x32xf32>
    tpu.vector_store %arg4[%c0_77, %266, %c0_78, %c0_79], %269 {strides = array<i32>} : memref<1x8x2x32xf32, #tpu.memory_space<vmem>>, vector<1x1x2x32xf32>,
    %270 = vector.broadcast %238 : vector<2x1xf32> to vector<2x32xf32>
    %271 = arith.mulf %270, %263 : vector<2x32xf32>
    %cst_80 = arith.constant 1.000000e+00 : f32
    %272 = vector.broadcast %cst_80 : f32 to vector<2x1xf32>
    %273 = arith.subf %272, %238 : vector<2x1xf32>
    %274 = vector.broadcast %273 : vector<2x1xf32> to vector<2x32xf32>
    %275 = arith.mulf %274, %220 : vector<2x32xf32>
    %276 = arith.addf %271, %275 : vector<2x32xf32>
    %277 = vector.broadcast %238 : vector<2x1xf32> to vector<2x32xf32>
    %278 = arith.mulf %277, %261 : vector<2x32xf32>
    %cst_81 = arith.constant 1.000000e+00 : f32
    %279 = vector.broadcast %cst_81 : f32 to vector<2x1xf32>
    %280 = arith.subf %279, %238 : vector<2x1xf32>
    %281 = vector.broadcast %280 : vector<2x1xf32> to vector<2x32xf32>
    %282 = arith.mulf %281, %227 : vector<2x32xf32>
    %283 = arith.addf %278, %282 : vector<2x32xf32>
    %c5_i32 = arith.constant 5 : i32
    %c0_i32_82 = arith.constant 0 : i32
    %284 = arith.cmpi eq, %arg0, %c0_i32_82 : i32
    %c7_i32_83 = arith.constant 7 : i32
    %285 = arith.subi %c7_i32_83, %c5_i32 : i32
    %286 = arith.select %284, %c5_i32, %285 : i32
    %c0_84 = arith.constant 0 : index
    %287 = arith.index_cast %286 : i32 to index
    %c0_85 = arith.constant 0 : index
    %c0_86 = arith.constant 0 : index
    %288 = vector.load %arg1[%c0_84, %287, %c0_85, %c0_86] : memref<1x8x2x128xf32, #tpu.memory_space<vmem>>, vector<1x1x2x128xf32>
    %289 = vector.shape_cast %288 : vector<1x1x2x128xf32> to vector<2x128xf32>
    %cst_87 = arith.constant dense<0.000000e+00> : vector<2x128xf32>
    %290 = tpu.matmul %276, %1, %cst_87 {dimension_numbers = #tpu.dot_dimension_numbers<[1], [0], [0], [1], [0, 0, 1, 1], [], []>} : vector<2x32xf32>, vector<32x128xf32>, vector<2x128xf32> -> vector<2x128xf32>
    %291 = arith.addf %289, %290 : vector<2x128xf32>
    %292 = arith.index_cast %286 : i32 to index
    %c0_88 = arith.constant 0 : index
    %c0_89 = arith.constant 0 : index
    %293 = vector.load %arg2[%292, %c0_88, %c0_89] : memref<8x2x1xf32, #tpu.memory_space<vmem>>, vector<1x2x1xf32>
    %294 = vector.shape_cast %293 : vector<1x2x1xf32> to vector<2x1xf32>
    %295 = vector.extract_strided_slice %291 {offsets = [0, 0], sizes = [2, 32], strides = [1, 1]} : vector<2x128xf32> to vector<2x32xf32>
    %296 = arith.negf %295 : vector<2x32xf32>
    %297 = math.exp %296 : vector<2x32xf32>
    %cst_90 = arith.constant 1.000000e+00 : f32
    %298 = vector.broadcast %cst_90 : f32 to vector<2x32xf32>
    %299 = arith.addf %298, %297 : vector<2x32xf32>
    %300 = arith.divf %298, %299 : vector<2x32xf32>
    %301 = vector.extract_strided_slice %291 {offsets = [0, 32], sizes = [2, 32], strides = [1, 1]} : vector<2x128xf32> to vector<2x32xf32>
    %302 = arith.negf %301 : vector<2x32xf32>
    %303 = math.exp %302 : vector<2x32xf32>
    %cst_91 = arith.constant 1.000000e+00 : f32
    %304 = vector.broadcast %cst_91 : f32 to vector<2x32xf32>
    %305 = arith.addf %304, %303 : vector<2x32xf32>
    %306 = arith.divf %304, %305 : vector<2x32xf32>
    %307 = vector.extract_strided_slice %291 {offsets = [0, 64], sizes = [2, 32], strides = [1, 1]} : vector<2x128xf32> to vector<2x32xf32>
    %308 = math.tanh %307 : vector<2x32xf32>
    %309 = vector.extract_strided_slice %291 {offsets = [0, 96], sizes = [2, 32], strides = [1, 1]} : vector<2x128xf32> to vector<2x32xf32>
    %310 = arith.negf %309 : vector<2x32xf32>
    %311 = math.exp %310 : vector<2x32xf32>
    %cst_92 = arith.constant 1.000000e+00 : f32
    %312 = vector.broadcast %cst_92 : f32 to vector<2x32xf32>
    %313 = arith.addf %312, %311 : vector<2x32xf32>
    %314 = arith.divf %312, %313 : vector<2x32xf32>
    %315 = arith.mulf %306, %283 : vector<2x32xf32>
    %316 = arith.mulf %300, %308 : vector<2x32xf32>
    %317 = arith.addf %315, %316 : vector<2x32xf32>
    %318 = math.tanh %317 : vector<2x32xf32>
    %319 = arith.mulf %314, %318 : vector<2x32xf32>
    %320 = vector.broadcast %294 : vector<2x1xf32> to vector<2x32xf32>
    %321 = arith.mulf %320, %319 : vector<2x32xf32>
    %c0_93 = arith.constant 0 : index
    %322 = arith.index_cast %286 : i32 to index
    %c0_94 = arith.constant 0 : index
    %c0_95 = arith.constant 0 : index
    %323 = vector.load %arg4[%c0_93, %322, %c0_94, %c0_95] : memref<1x8x2x32xf32, #tpu.memory_space<vmem>>, vector<1x1x2x32xf32>
    %324 = vector.shape_cast %323 : vector<1x1x2x32xf32> to vector<2x32xf32>
    %325 = vector.shape_cast %321 : vector<2x32xf32> to vector<1x1x2x32xf32>
    tpu.vector_store %arg4[%c0_93, %322, %c0_94, %c0_95], %325 {strides = array<i32>} : memref<1x8x2x32xf32, #tpu.memory_space<vmem>>, vector<1x1x2x32xf32>,
    %326 = vector.broadcast %294 : vector<2x1xf32> to vector<2x32xf32>
    %327 = arith.mulf %326, %319 : vector<2x32xf32>
    %cst_96 = arith.constant 1.000000e+00 : f32
    %328 = vector.broadcast %cst_96 : f32 to vector<2x1xf32>
    %329 = arith.subf %328, %294 : vector<2x1xf32>
    %330 = vector.broadcast %329 : vector<2x1xf32> to vector<2x32xf32>
    %331 = arith.mulf %330, %276 : vector<2x32xf32>
    %332 = arith.addf %327, %331 : vector<2x32xf32>
    %333 = vector.broadcast %294 : vector<2x1xf32> to vector<2x32xf32>
    %334 = arith.mulf %333, %317 : vector<2x32xf32>
    %cst_97 = arith.constant 1.000000e+00 : f32
    %335 = vector.broadcast %cst_97 : f32 to vector<2x1xf32>
    %336 = arith.subf %335, %294 : vector<2x1xf32>
    %337 = vector.broadcast %336 : vector<2x1xf32> to vector<2x32xf32>
    %338 = arith.mulf %337, %283 : vector<2x32xf32>
    %339 = arith.addf %334, %338 : vector<2x32xf32>
    %c6_i32 = arith.constant 6 : i32
    %c0_i32_98 = arith.constant 0 : i32
    %340 = arith.cmpi eq, %arg0, %c0_i32_98 : i32
    %c7_i32_99 = arith.constant 7 : i32
    %341 = arith.subi %c7_i32_99, %c6_i32 : i32
    %342 = arith.select %340, %c6_i32, %341 : i32
    %c0_100 = arith.constant 0 : index
    %343 = arith.index_cast %342 : i32 to index
    %c0_101 = arith.constant 0 : index
    %c0_102 = arith.constant 0 : index
    %344 = vector.load %arg1[%c0_100, %343, %c0_101, %c0_102] : memref<1x8x2x128xf32, #tpu.memory_space<vmem>>, vector<1x1x2x128xf32>
    %345 = vector.shape_cast %344 : vector<1x1x2x128xf32> to vector<2x128xf32>
    %cst_103 = arith.constant dense<0.000000e+00> : vector<2x128xf32>
    %346 = tpu.matmul %332, %1, %cst_103 {dimension_numbers = #tpu.dot_dimension_numbers<[1], [0], [0], [1], [0, 0, 1, 1], [], []>} : vector<2x32xf32>, vector<32x128xf32>, vector<2x128xf32> -> vector<2x128xf32>
    %347 = arith.addf %345, %346 : vector<2x128xf32>
    %348 = arith.index_cast %342 : i32 to index
    %c0_104 = arith.constant 0 : index
    %c0_105 = arith.constant 0 : index
    %349 = vector.load %arg2[%348, %c0_104, %c0_105] : memref<8x2x1xf32, #tpu.memory_space<vmem>>, vector<1x2x1xf32>
    %350 = vector.shape_cast %349 : vector<1x2x1xf32> to vector<2x1xf32>
    %351 = vector.extract_strided_slice %347 {offsets = [0, 0], sizes = [2, 32], strides = [1, 1]} : vector<2x128xf32> to vector<2x32xf32>
    %352 = arith.negf %351 : vector<2x32xf32>
    %353 = math.exp %352 : vector<2x32xf32>
    %cst_106 = arith.constant 1.000000e+00 : f32
    %354 = vector.broadcast %cst_106 : f32 to vector<2x32xf32>
    %355 = arith.addf %354, %353 : vector<2x32xf32>
    %356 = arith.divf %354, %355 : vector<2x32xf32>
    %357 = vector.extract_strided_slice %347 {offsets = [0, 32], sizes = [2, 32], strides = [1, 1]} : vector<2x128xf32> to vector<2x32xf32>
    %358 = arith.negf %357 : vector<2x32xf32>
    %359 = math.exp %358 : vector<2x32xf32>
    %cst_107 = arith.constant 1.000000e+00 : f32
    %360 = vector.broadcast %cst_107 : f32 to vector<2x32xf32>
    %361 = arith.addf %360, %359 : vector<2x32xf32>
    %362 = arith.divf %360, %361 : vector<2x32xf32>
    %363 = vector.extract_strided_slice %347 {offsets = [0, 64], sizes = [2, 32], strides = [1, 1]} : vector<2x128xf32> to vector<2x32xf32>
    %364 = math.tanh %363 : vector<2x32xf32>
    %365 = vector.extract_strided_slice %347 {offsets = [0, 96], sizes = [2, 32], strides = [1, 1]} : vector<2x128xf32> to vector<2x32xf32>
    %366 = arith.negf %365 : vector<2x32xf32>
    %367 = math.exp %366 : vector<2x32xf32>
    %cst_108 = arith.constant 1.000000e+00 : f32
    %368 = vector.broadcast %cst_108 : f32 to vector<2x32xf32>
    %369 = arith.addf %368, %367 : vector<2x32xf32>
    %370 = arith.divf %368, %369 : vector<2x32xf32>
    %371 = arith.mulf %362, %339 : vector<2x32xf32>
    %372 = arith.mulf %356, %364 : vector<2x32xf32>
    %373 = arith.addf %371, %372 : vector<2x32xf32>
    %374 = math.tanh %373 : vector<2x32xf32>
    %375 = arith.mulf %370, %374 : vector<2x32xf32>
    %376 = vector.broadcast %350 : vector<2x1xf32> to vector<2x32xf32>
    %377 = arith.mulf %376, %375 : vector<2x32xf32>
    %c0_109 = arith.constant 0 : index
    %378 = arith.index_cast %342 : i32 to index
    %c0_110 = arith.constant 0 : index
    %c0_111 = arith.constant 0 : index
    %379 = vector.load %arg4[%c0_109, %378, %c0_110, %c0_111] : memref<1x8x2x32xf32, #tpu.memory_space<vmem>>, vector<1x1x2x32xf32>
    %380 = vector.shape_cast %379 : vector<1x1x2x32xf32> to vector<2x32xf32>
    %381 = vector.shape_cast %377 : vector<2x32xf32> to vector<1x1x2x32xf32>
    tpu.vector_store %arg4[%c0_109, %378, %c0_110, %c0_111], %381 {strides = array<i32>} : memref<1x8x2x32xf32, #tpu.memory_space<vmem>>, vector<1x1x2x32xf32>,
    %382 = vector.broadcast %350 : vector<2x1xf32> to vector<2x32xf32>
    %383 = arith.mulf %382, %375 : vector<2x32xf32>
    %cst_112 = arith.constant 1.000000e+00 : f32
    %384 = vector.broadcast %cst_112 : f32 to vector<2x1xf32>
    %385 = arith.subf %384, %350 : vector<2x1xf32>
    %386 = vector.broadcast %385 : vector<2x1xf32> to vector<2x32xf32>
    %387 = arith.mulf %386, %332 : vector<2x32xf32>
    %388 = arith.addf %383, %387 : vector<2x32xf32>
    %389 = vector.broadcast %350 : vector<2x1xf32> to vector<2x32xf32>
    %390 = arith.mulf %389, %373 : vector<2x32xf32>
    %cst_113 = arith.constant 1.000000e+00 : f32
    %391 = vector.broadcast %cst_113 : f32 to vector<2x1xf32>
    %392 = arith.subf %391, %350 : vector<2x1xf32>
    %393 = vector.broadcast %392 : vector<2x1xf32> to vector<2x32xf32>
    %394 = arith.mulf %393, %339 : vector<2x32xf32>
    %395 = arith.addf %390, %394 : vector<2x32xf32>
    %c7_i32_114 = arith.constant 7 : i32
    %c0_i32_115 = arith.constant 0 : i32
    %396 = arith.cmpi eq, %arg0, %c0_i32_115 : i32
    %c7_i32_116 = arith.constant 7 : i32
    %397 = arith.subi %c7_i32_116, %c7_i32_114 : i32
    %398 = arith.select %396, %c7_i32_114, %397 : i32
    %c0_117 = arith.constant 0 : index
    %399 = arith.index_cast %398 : i32 to index
    %c0_118 = arith.constant 0 : index
    %c0_119 = arith.constant 0 : index
    %400 = vector.load %arg1[%c0_117, %399, %c0_118, %c0_119] : memref<1x8x2x128xf32, #tpu.memory_space<vmem>>, vector<1x1x2x128xf32>
    %401 = vector.shape_cast %400 : vector<1x1x2x128xf32> to vector<2x128xf32>
    %cst_120 = arith.constant dense<0.000000e+00> : vector<2x128xf32>
    %402 = tpu.matmul %388, %1, %cst_120 {dimension_numbers = #tpu.dot_dimension_numbers<[1], [0], [0], [1], [0, 0, 1, 1], [], []>} : vector<2x32xf32>, vector<32x128xf32>, vector<2x128xf32> -> vector<2x128xf32>
    %403 = arith.addf %401, %402 : vector<2x128xf32>
    %404 = arith.index_cast %398 : i32 to index
    %c0_121 = arith.constant 0 : index
    %c0_122 = arith.constant 0 : index
    %405 = vector.load %arg2[%404, %c0_121, %c0_122] : memref<8x2x1xf32, #tpu.memory_space<vmem>>, vector<1x2x1xf32>
    %406 = vector.shape_cast %405 : vector<1x2x1xf32> to vector<2x1xf32>
    %407 = vector.extract_strided_slice %403 {offsets = [0, 0], sizes = [2, 32], strides = [1, 1]} : vector<2x128xf32> to vector<2x32xf32>
    %408 = arith.negf %407 : vector<2x32xf32>
    %409 = math.exp %408 : vector<2x32xf32>
    %cst_123 = arith.constant 1.000000e+00 : f32
    %410 = vector.broadcast %cst_123 : f32 to vector<2x32xf32>
    %411 = arith.addf %410, %409 : vector<2x32xf32>
    %412 = arith.divf %410, %411 : vector<2x32xf32>
    %413 = vector.extract_strided_slice %403 {offsets = [0, 32], sizes = [2, 32], strides = [1, 1]} : vector<2x128xf32> to vector<2x32xf32>
    %414 = arith.negf %413 : vector<2x32xf32>
    %415 = math.exp %414 : vector<2x32xf32>
    %cst_124 = arith.constant 1.000000e+00 : f32
    %416 = vector.broadcast %cst_124 : f32 to vector<2x32xf32>
    %417 = arith.addf %416, %415 : vector<2x32xf32>
    %418 = arith.divf %416, %417 : vector<2x32xf32>
    %419 = vector.extract_strided_slice %403 {offsets = [0, 64], sizes = [2, 32], strides = [1, 1]} : vector<2x128xf32> to vector<2x32xf32>
    %420 = math.tanh %419 : vector<2x32xf32>
    %421 = vector.extract_strided_slice %403 {offsets = [0, 96], sizes = [2, 32], strides = [1, 1]} : vector<2x128xf32> to vector<2x32xf32>
    %422 = arith.negf %421 : vector<2x32xf32>
    %423 = math.exp %422 : vector<2x32xf32>
    %cst_125 = arith.constant 1.000000e+00 : f32
    %424 = vector.broadcast %cst_125 : f32 to vector<2x32xf32>
    %425 = arith.addf %424, %423 : vector<2x32xf32>
    %426 = arith.divf %424, %425 : vector<2x32xf32>
    %427 = arith.mulf %418, %395 : vector<2x32xf32>
    %428 = arith.mulf %412, %420 : vector<2x32xf32>
    %429 = arith.addf %427, %428 : vector<2x32xf32>
    %430 = math.tanh %429 : vector<2x32xf32>
    %431 = arith.mulf %426, %430 : vector<2x32xf32>
    %432 = vector.broadcast %406 : vector<2x1xf32> to vector<2x32xf32>
    %433 = arith.mulf %432, %431 : vector<2x32xf32>
    %c0_126 = arith.constant 0 : index
    %434 = arith.index_cast %398 : i32 to index
    %c0_127 = arith.constant 0 : index
    %c0_128 = arith.constant 0 : index
    %435 = vector.load %arg4[%c0_126, %434, %c0_127, %c0_128] : memref<1x8x2x32xf32, #tpu.memory_space<vmem>>, vector<1x1x2x32xf32>
    %436 = vector.shape_cast %435 : vector<1x1x2x32xf32> to vector<2x32xf32>
    %437 = vector.shape_cast %433 : vector<2x32xf32> to vector<1x1x2x32xf32>
    tpu.vector_store %arg4[%c0_126, %434, %c0_127, %c0_128], %437 {strides = array<i32>} : memref<1x8x2x32xf32, #tpu.memory_space<vmem>>, vector<1x1x2x32xf32>,
    %438 = vector.broadcast %406 : vector<2x1xf32> to vector<2x32xf32>
    %439 = arith.mulf %438, %431 : vector<2x32xf32>
    %cst_129 = arith.constant 1.000000e+00 : f32
    %440 = vector.broadcast %cst_129 : f32 to vector<2x1xf32>
    %441 = arith.subf %440, %406 : vector<2x1xf32>
    %442 = vector.broadcast %441 : vector<2x1xf32> to vector<2x32xf32>
    %443 = arith.mulf %442, %388 : vector<2x32xf32>
    %444 = arith.addf %439, %443 : vector<2x32xf32>
    %445 = vector.broadcast %406 : vector<2x1xf32> to vector<2x32xf32>
    %446 = arith.mulf %445, %429 : vector<2x32xf32>
    %cst_130 = arith.constant 1.000000e+00 : f32
    %447 = vector.broadcast %cst_130 : f32 to vector<2x1xf32>
    %448 = arith.subf %447, %406 : vector<2x1xf32>
    %449 = vector.broadcast %448 : vector<2x1xf32> to vector<2x32xf32>
    %450 = arith.mulf %449, %395 : vector<2x32xf32>
    %451 = arith.addf %446, %450 : vector<2x32xf32>
    %c8_i32 = arith.constant 8 : i32
    return
  }
  func.func @transform_0(%arg0: i32) -> (i32, i32, i32, i32) {
    %c0_i32 = arith.constant 0 : i32
    %c0_i32_0 = arith.constant 0 : i32
    %c0_i32_1 = arith.constant 0 : i32
    %c0_i32_2 = arith.constant 0 : i32
    return %arg0, %c0_i32, %c0_i32_0, %c0_i32_1 : i32, i32, i32, i32
  }
  func.func @transform_1(%arg0: i32) -> (i32, i32, i32) {
    %c0_i32 = arith.constant 0 : i32
    %c0_i32_0 = arith.constant 0 : i32
    %c0_i32_1 = arith.constant 0 : i32
    %c0_i32_2 = arith.constant 0 : i32
    return %c0_i32, %c0_i32_0, %c0_i32_1 : i32, i32, i32
  }
  func.func @transform_2(%arg0: i32) -> (i32, i32, i32) {
    %c0_i32 = arith.constant 0 : i32
    %c0_i32_0 = arith.constant 0 : i32
    %c0_i32_1 = arith.constant 0 : i32
    return %arg0, %c0_i32, %c0_i32_0 : i32, i32, i32
  }
  func.func @transform_3(%arg0: i32) -> (i32, i32, i32, i32) {
    %c0_i32 = arith.constant 0 : i32
    %c0_i32_0 = arith.constant 0 : i32
    %c0_i32_1 = arith.constant 0 : i32
    %c0_i32_2 = arith.constant 0 : i32
    return %arg0, %c0_i32, %c0_i32_0, %c0_i32_1 : i32, i32, i32, i32
  }
}

</mosaic_0001>

<llo_original>
// kernel: tpu_custom_call.1
$region0: #{tpu_custom_call.1}
  #allocation0 [shape = 'u32[]', space=smem, size = 0x4, offset = 0x4, fixed_abs, tag = 'smem constant byte address 0x4 - core index']
  #allocation1 [shape = 'u32[144,128]{1,0:T(1,128)}', space=vmem, size = 0x12000, scoped, tag = 'internal scratch']
  %s0 = inlined_call_operand.hbm [shape: f32[2,8,2,128], index: 0, kind: input, shape index: {}]
  %s1 = inlined_call_operand.vmem [shape: f32[8,2,1], index: 1, kind: input, shape index: {}]
  %s2 = inlined_call_operand.hbm [shape: f32[2,32,128], index: 2, kind: input, shape index: {}]
  %s3 = inlined_call_operand.hbm [shape: f32[2,8,2,32], index: 3, kind: output, shape index: {}]
  %s4 = sld [smem:[#allocation0]]
  $region53: #{tpu_custom_call.1} parent=0
    _
  %s6 = ssub.s32 1, %s4
  %s7 = scalar_select 0, %s6, %s4
  $region1: #{tpu_custom_call.1} parent=0
    #allocation2 [shape = 'u8[16384]{0}', space=vmem, size = 0x4000, scoped, tag = 'input window, operand 0']
    #allocation3 [shape = 's32[2]{0}', space=sflag, size = 0x8, scoped, tag = 'scoped memory for tpu_custom_call.1']
    #allocation4 [shape = 's32[2]{0}', space=sflag, size = 0x8, scoped, tag = 'scoped memory for tpu_custom_call.1']
    #allocation5 [shape = 'u8[32768]{0}', space=vmem, size = 0x8000, scoped, tag = 'input window, operand 2']
    #allocation6 [shape = 's32[2]{0}', space=sflag, size = 0x8, scoped, tag = 'scoped memory for tpu_custom_call.1']
    #allocation7 [shape = 'u8[16384]{0}', space=vmem, size = 0x4000, scoped, tag = 'output window, operand 0']
    %8 = vsyncpa [#allocation3], 0
    %s9 = scalar_lea.sflag [#allocation3], 1
    %10 = vsyncpa %s9, 0
    %11 = vsyncpa [#allocation6], 0
    %s12 = scalar_lea.sflag [#allocation6], 1
    %13 = vsyncpa %s12, 0
    %14 = vsyncpa [#allocation4], 0
    %s15 = scalar_lea.sflag [#allocation4], 1
    %16 = vsyncpa %s15, 0
    loop: start=0, step=1, limit=4
    $region2: #{tpu_custom_call.1} parent=1 // loop_pre_header
      _
    $region3: #{tpu_custom_call.1} parent=1 // loop_header
      %s18 = sphi 0, %s22
      %p19 = scmp.ge.s32.totalorder %s18, 4
      %s28 = sphi 0, %s30
      %s31 = sphi 0, %s28
      %s32 = sphi 0, %s31
      %s48 = sphi 0, %s32
      %s52 = sphi 0, %s52
      %s54 = sphi 0, %s52
      %s55 = sphi 0, %s54
      %s69 = sphi 0, %s55
      %s75 = sphi 0, %s77
      %s78 = sphi 0, %s75
      %s79 = sphi 0, %s78
      %s95 = sphi 0, %s79
      %s101 = sphi 0, %s103
      %s104 = sphi 0, %s101
      %s105 = sphi 0, %s104
      %s121 = sphi 0, %s105
    $region4: #{tpu_custom_call.1} parent=1 // loop_header_branch
      %21 = sbr.rel (%p19) target = $region8
    $region5: #{tpu_custom_call.1} parent=1 // loop_body
      %s23 = ssub.s32 %s18, 1
      %s24 = ssub.s32 %s18, 2
      %s25 = sadd.s32 %s18, 1
      %s26 = ssub.s32 %s18, %s25
      %p27 = scmp.eq.s32.totalorder %s26, 0
      %s29 = sadd.s32 %s28, 1
      %s30 = scalar_select %p27, %s28, %s29
      %p33 = pneg %p27
      %p34 = scmp.eq.s32.totalorder %s18, 1
      %p35 = por %p33, %p34
      %p36 = scmp.ne.s32.totalorder %s28, %s31
      %p37 = scmp.eq.s32.totalorder %s18, 0
      %p38 = por %p36, %p37
      %p39 = scmp.ne.s32.totalorder %s28, %s31
      %p40 = scmp.eq.s32.totalorder %s23, 1
      %p41 = por %p39, %p40
      %p42 = scmp.ne.s32.totalorder %s31, %s32
      %p43 = scmp.eq.s32.totalorder %s23, 0
      %p44 = por %p42, %p43
      %p45 = scmp.ne.s32.totalorder %s31, %s32
      %p46 = scmp.eq.s32.totalorder %s24, 1
      %p47 = por %p45, %p46
      %p49 = scmp.ne.s32.totalorder %s32, %s48
      %p50 = scmp.eq.s32.totalorder %s24, 0
      %p51 = por %p49, %p50
      %s53 = sadd.s32 %s52, 1
      %p56 = scmp.eq.s32.totalorder %s18, 1
      %p57 = scmp.ne.s32.totalorder %s52, %s54
      %p58 = scmp.eq.s32.totalorder %s18, 0
      %p59 = por %p57, %p58
      %p60 = scmp.ne.s32.totalorder %s52, %s54
      %p61 = scmp.eq.s32.totalorder %s23, 1
      %p62 = por %p60, %p61
      %p63 = scmp.ne.s32.totalorder %s54, %s55
      %p64 = scmp.eq.s32.totalorder %s23, 0
      %p65 = por %p63, %p64
      %p66 = scmp.ne.s32.totalorder %s54, %s55
      %p67 = scmp.eq.s32.totalorder %s24, 1
      %p68 = por %p66, %p67
      %p70 = scmp.ne.s32.totalorder %s55, %s69
      %p71 = scmp.eq.s32.totalorder %s24, 0
      %p72 = por %p70, %p71
      %s73 = ssub.s32 %s18, %s25
      %p74 = scmp.eq.s32.totalorder %s73, 0
      %s76 = sadd.s32 %s75, 1
      %s77 = scalar_select %p74, %s75, %s76
      %p80 = pneg %p74
      %p81 = scmp.eq.s32.totalorder %s18, 1
      %p82 = por %p80, %p81
      %p83 = scmp.ne.s32.totalorder %s75, %s78
      %p84 = scmp.eq.s32.totalorder %s18, 0
      %p85 = por %p83, %p84
      %p86 = scmp.ne.s32.totalorder %s75, %s78
      %p87 = scmp.eq.s32.totalorder %s23, 1
      %p88 = por %p86, %p87
      %p89 = scmp.ne.s32.totalorder %s78, %s79
      %p90 = scmp.eq.s32.totalorder %s23, 0
      %p91 = por %p89, %p90
      %p92 = scmp.ne.s32.totalorder %s78, %s79
      %p93 = scmp.eq.s32.totalorder %s24, 1
      %p94 = por %p92, %p93
      %p96 = scmp.ne.s32.totalorder %s79, %s95
      %p97 = scmp.eq.s32.totalorder %s24, 0
      %p98 = por %p96, %p97
      %s99 = ssub.s32 %s18, %s25
      %p100 = scmp.eq.s32.totalorder %s99, 0
      %s102 = sadd.s32 %s101, 1
      %s103 = scalar_select %p100, %s101, %s102
      %p106 = pneg %p100
      %p107 = scmp.eq.s32.totalorder %s18, 1
      %p108 = por %p106, %p107
      %p109 = scmp.ne.s32.totalorder %s101, %s104
      %p110 = scmp.eq.s32.totalorder %s18, 0
      %p111 = por %p109, %p110
      %p112 = scmp.ne.s32.totalorder %s101, %s104
      %p113 = scmp.eq.s32.totalorder %s23, 1
      %p114 = por %p112, %p113
      %p115 = scmp.ne.s32.totalorder %s104, %s105
      %p116 = scmp.eq.s32.totalorder %s23, 0
      %p117 = por %p115, %p116
      %p118 = scmp.ne.s32.totalorder %s104, %s105
      %p119 = scmp.eq.s32.totalorder %s24, 1
      %p120 = por %p118, %p119
      %p122 = scmp.ne.s32.totalorder %s105, %s121
      %p123 = scmp.eq.s32.totalorder %s24, 0
      %p124 = por %p122, %p123
      %p125 = scmp.le.s32.totalorder 1, %s18
      %p126 = scmp.lt.s32.totalorder %s18, 3
      %p127 = pnand %p125, %p126
      %p128 = pneg %p127
      // Predicated region
      $region9: #{tpu_custom_call.1} parent=5 // pred_check
        _
      $region10: #{tpu_custom_call.1} parent=5 // pred_check_branch
        %130 = sbr.rel (%p127) target = $region12
      $region11: #{tpu_custom_call.1} parent=5 // pred_region
        %s131 = ssub.s32 %s18, 1
        // Predicated region
        $region13: #{tpu_custom_call.1} parent=11 // pred_check
          %p132 = pneg %p65
        $region14: #{tpu_custom_call.1} parent=11 // pred_check_branch
          %134 = sbr.rel (%p132) target = $region16
        $region15: #{tpu_custom_call.1} parent=11 // pred_region
          _
        $region16: #{tpu_custom_call.1} parent=11 // pred_fallthru
          _
      $region12: #{tpu_custom_call.1} parent=5 // pred_fallthru
        _
      %p135 = scmp.lt.s32.totalorder %s18, 2
      // Predicated region
      $region17: #{tpu_custom_call.1} parent=5 // pred_check
        %p136 = pneg %p135
      $region18: #{tpu_custom_call.1} parent=5 // pred_check_branch
        %138 = sbr.rel (%p136) target = $region20
      $region19: #{tpu_custom_call.1} parent=5 // pred_region
        // Predicated region
        $region21: #{tpu_custom_call.1} parent=19 // pred_check
          %p139 = pneg %p38
        $region22: #{tpu_custom_call.1} parent=19 // pred_check_branch
          %141 = sbr.rel (%p139) target = $region24
        $region23: #{tpu_custom_call.1} parent=19 // pred_region
          %s142 = sand.u32 %s28, 1
          %s143 = scalar_lea.sflag [#allocation3], %s142
          %s144 = sand.u32 %s28, 1
          %s145 = smul.addr %s144, 16
          %s146 = scalar_lea.vmem [#allocation2], %s145
          %s148 = ssub.s32 256, 256
          %149 = vsyncadd %s143, %s148
          %s150 = smul.addr %s18, 8
          %s151 = smul.addr %s150, 32
          %s152 = scalar_lea.hbm %s0, %s151
          %s153 = sshll.u32 %s146, 4
          %s154 = int_to_ptr.vmem [resolvable:$true] %s153
          %159 = dma.hbm_to_vmem [thread:$0]  %s152, 256, %s154, %s143, 32, 32, 2
        $region24: #{tpu_custom_call.1} parent=19 // pred_fallthru
          _
        // Predicated region
        $region25: #{tpu_custom_call.1} parent=19 // pred_check
          %p160 = pneg %p85
        $region26: #{tpu_custom_call.1} parent=19 // pred_check_branch
          %162 = sbr.rel (%p160) target = $region28
        $region27: #{tpu_custom_call.1} parent=19 // pred_region
          %s163 = sand.u32 %s75, 1
          %s164 = scalar_lea.sflag [#allocation6], %s163
          %s165 = sand.u32 %s75, 1
          %s166 = smul.addr %s165, 32
          %s167 = scalar_lea.vmem [#allocation5], %s166
          %s169 = ssub.s32 512, 512
          %170 = vsyncadd %s164, %s169
          %s171 = smul.addr %s18, 4
          %s172 = smul.addr %s171, 128
          %s173 = scalar_lea.hbm %s2, %s172
          %s174 = sshll.u32 %s167, 4
          %s175 = int_to_ptr.vmem [resolvable:$true] %s174
          %180 = dma.hbm_to_vmem [thread:$0]  %s173, 512, %s175, %s164, 128, 128, 8
        $region28: #{tpu_custom_call.1} parent=19 // pred_fallthru
          _
      $region20: #{tpu_custom_call.1} parent=5 // pred_fallthru
        _
      %p181 = scmp.le.s32.totalorder 1, %s18
      %p182 = scmp.lt.s32.totalorder %s18, 3
      %p183 = pnand %p181, %p182
      %p184 = pneg %p183
      // Predicated region
      $region29: #{tpu_custom_call.1} parent=5 // pred_check
        _
      $region30: #{tpu_custom_call.1} parent=5 // pred_check_branch
        %186 = sbr.rel (%p183) target = $region32
      $region31: #{tpu_custom_call.1} parent=5 // pred_region
        %s187 = ssub.s32 %s18, 1
        %s188 = sand.u32 %s31, 1
        %s189 = scalar_lea.sflag [#allocation3], %s188
        %s190 = sand.u32 %s31, 1
        %s191 = smul.addr %s190, 16
        %s192 = scalar_lea.vmem [#allocation2], %s191
        // Predicated region
        $region33: #{tpu_custom_call.1} parent=31 // pred_check
          %p193 = pneg %p44
        $region34: #{tpu_custom_call.1} parent=31 // pred_check_branch
          %195 = sbr.rel (%p193) target = $region36
        $region35: #{tpu_custom_call.1} parent=31 // pred_region
          %196 = dma.done %s189, 256
        $region36: #{tpu_custom_call.1} parent=31 // pred_fallthru
          _
        %s197 = sand.u32 %s78, 1
        %s198 = scalar_lea.sflag [#allocation6], %s197
        %s199 = sand.u32 %s78, 1
        %s200 = smul.addr %s199, 32
        %s201 = scalar_lea.vmem [#allocation5], %s200
        // Predicated region
        $region37: #{tpu_custom_call.1} parent=31 // pred_check
          %p202 = pneg %p91
        $region38: #{tpu_custom_call.1} parent=31 // pred_check_branch
          %204 = sbr.rel (%p202) target = $region40
        $region39: #{tpu_custom_call.1} parent=31 // pred_region
          %205 = dma.done %s198, 512
        $region40: #{tpu_custom_call.1} parent=31 // pred_fallthru
          _
        %s206 = sand.u32 %s31, 1
        %s207 = scalar_lea.sflag [#allocation3], %s206
        %s208 = sand.u32 %s31, 1
        %s209 = smul.addr %s208, 16
        %s210 = scalar_lea.vmem [#allocation2], %s209
        %p211 = pneg %p44
        %p212 = pneg %p41
        %p213 = pneg %p65
        %p214 = pneg %p62
        %s215 = sand.u32 %s78, 1
        %s216 = scalar_lea.sflag [#allocation6], %s215
        %s217 = sand.u32 %s78, 1
        %s218 = smul.addr %s217, 32
        %s219 = scalar_lea.vmem [#allocation5], %s218
        %p220 = pneg %p91
        %p221 = pneg %p88
        %p222 = pneg %p117
        %p223 = pneg %p114
        %s224 = sand.u32 %s104, 1
        %s225 = scalar_lea.sflag [#allocation4], %s224
        %s226 = sand.u32 %s104, 1
        %s227 = smul.addr %s226, 16
        %s228 = scalar_lea.vmem [#allocation7], %s227
        %v229 = vld [vmem:[%s201] sm:$0xff]
        %v230 = vld [vmem:[%s201 + $0x8] sm:$0xff]
        %v231 = vld [vmem:[%s201 + $0x10] sm:$0xff]
        %v232 = vld [vmem:[%s201 + $0x18] sm:$0xff]
        %p233 = scmp.eq.s32.totalorder %s23, 0
        %s234 = scalar_select %p233, 0, 7
        %s235 = smul.u32 %s234, 2
        %s236 = scalar_lea.vmem %s192, %s235 [#allocation2]
        %v237 = vld [vmem:[%s236] sm:$0x3]
        %vm238 = vcmask 261120
        %v240 = vsel %vm238, 0.0, 0
        %242 = vmatprep.subr.mxu0 0.0
        %243 = vmatpush1.msra.mxu0 %v229
        %244 = vmatprep.subr.mxu0 0.0
        %245 = vmatpush1.msra.mxu0 %v230
        %246 = vmatprep.subr.mxu0 0.0
        %247 = vmatpush1.msra.mxu0 %v231
        %248 = vmatprep.subr.mxu0 0.0
        %249 = vmatpush1.msra.mxu0 %v232
        %250 = vmatprep.subr.mxu0 0.0
        %251 = vmatpush1.msra.mxu0 0.0
        %252 = vmatprep.subr.mxu0 0.0
        %253 = vmatpush1.msra.mxu0 0.0
        %254 = vmatprep.subr.mxu0 0.0
        %255 = vmatpush1.msra.mxu0 0.0
        %256 = vmatprep.subr.mxu0 0.0
        %257 = vmatpush1.msra.mxu0 0.0
        %258 = vmatprep.subr.mxu0 0.0
        %259 = vmatpush1.msra.mxu0 0.0
        %260 = vmatprep.subr.mxu0 0.0
        %261 = vmatpush1.msra.mxu0 0.0
        %262 = vmatprep.subr.mxu0 0.0
        %263 = vmatpush1.msra.mxu0 0.0
        %264 = vmatprep.subr.mxu0 0.0
        %265 = vmatpush1.msra.mxu0 0.0
        %266 = vmatprep.subr.mxu0 0.0
        %267 = vmatpush1.msra.mxu0 0.0
        %268 = vmatprep.subr.mxu0 0.0
        %269 = vmatpush1.msra.mxu0 0.0
        %270 = vmatprep.subr.mxu0 0.0
        %271 = vmatpush1.msra.mxu0 0.0
        %272 = vmatprep.subr.mxu0 0.0
        %273 = vmatpush1.msra.mxu0 0.0
        %274 = vmatprep.subr.mxu0 0.0
        %275 = vmatpush1.msra.mxu0 0.0
        %276 = vmatprep.subr.mxu0 0.0
        %277 = vmatpush1.msra.mxu0 0.0
        %278 = vmatprep.subr.mxu0 0.0
        %279 = vmatpush1.msra.mxu0 0.0
        %280 = vmatprep.subr.mxu0 0.0
        %281 = vmatpush1.msra.mxu0 0.0
        %282 = vmatprep.subr.mxu0 0.0
        %283 = vmatpush1.msra.mxu0 0.0
        %284 = vmatprep.subr.mxu0 0.0
        %285 = vmatpush1.msra.mxu0 0.0
        %286 = vmatprep.subr.mxu0 0.0
        %287 = vmatpush1.msra.mxu0 0.0
        %288 = vmatprep.subr.mxu0 0.0
        %289 = vmatpush1.msra.mxu0 0.0
        %290 = vmatprep.subr.mxu0 0.0
        %291 = vmatpush1.msra.mxu0 0.0
        %292 = vmatprep.subr.mxu0 0.0
        %293 = vmatpush1.msra.mxu0 0.0
        %294 = vmatprep.subr.mxu0 0.0
        %295 = vmatpush1.msra.mxu0 0.0
        %296 = vmatprep.subr.mxu0 0.0
        %297 = vmatpush1.msra.mxu0 0.0
        %298 = vmatprep.subr.mxu0 0.0
        %299 = vmatpush1.msra.mxu0 0.0
        %300 = vmatprep.subr.mxu0 0.0
        %301 = vmatpush1.msra.mxu0 0.0
        %302 = vmatprep.subr.mxu0 0.0
        %303 = vmatpush1.msra.mxu0 0.0
        %304 = vmatprep.subr.mxu0 0.0
        %305 = vmatpush1.msra.mxu0 0.0
        %306 = vmatprep.mubr.f32.mxu0 0.0
        %307 = vmatmul.mubr.f32.gmra.mrb[0].mxu0 %v240
        %v308 = vpop.f32.mrb[0].mxu0
        %v309 = vadd.f32 0.0, %v308
        %v310 = vpop.f32.mrb[0].mxu0
        %311 = vdwg.mxu0
        %v312 = vadd.f32 %v237, %v309
        %s313 = scalar_lea.vmem %s1, %s235
        %v314 = vld [vmem:[%s313] sm:$0x3]
        %v315 = vxor.u32 %v312, 2147483648
        %v316 = vmul.f32 %v315, 1.442695
        %v317 = vpow.pop %v316
        %v318 = vadd.f32 %v317, 1.0
        %v319 = vrcp.pop %v318
        %v320 = vmul.f32 1.0, %v319
        %v321 = vtanh.pop %v312
        %v322 = vmul.f32 %v320, 0.0
        %324 = vrot.lane.b32.xlu0 %v321, 64
        %v325 = vpop.permute.xlu0 %324
        %v327 = vmul.f32 %v320, %v325
        %329 = vrot.lane.b32.xlu0 %v327, 32
        %v330 = vpop.permute.xlu0 %329
        %v332 = vadd.f32 %v322, %v330
        %v333 = vtanh.pop %v332
        %335 = vrot.lane.b32.xlu0 %v333, 64
        %v336 = vpop.permute.xlu0 %335
        %v338 = vmul.f32 %v320, %v336
        %340 = vset.pattern.permute.xlu0 0
        %341 = vperm.xlu0 %340, %v314
        %v342 = vpop.permute.xlu0 %341
        %v344 = vmul.f32 %v342, %v338
        %346 = vrot.lane.b32.xlu0 %v344, 32
        %v347 = vpop.permute.xlu0 %346
        %s349 = scalar_lea.vmem %s228, %s235 [#allocation7]
        %vm350 = vcmask 254976
        %351 = vst.msk [vmem:[%s349] sm:$0x3] %vm350, %v347
        %v352 = vsub.f32 1.0, %v314
        %354 = vset.pattern.permute.xlu0 0
        %355 = vperm.xlu0 %354, %v352
        %v356 = vpop.permute.xlu0 %355
        %v358 = vmul.f32 %v356, 0.0
        %v359 = vadd.f32 %v344, %v358
        %v360 = vmul.f32 %v342, %v332
        %v361 = vadd.f32 %v360, %v358
        %s362 = scalar_select %p233, 1, 6
        %s363 = smul.u32 %s362, 2
        %s364 = scalar_lea.vmem %s192, %s363 [#allocation2]
        %v365 = vld [vmem:[%s364] sm:$0x3]
        %367 = vrot.lane.b32.xlu0 %v359, 32
        %v368 = vpop.permute.xlu0 %367
        %v369 = vsel %vm238, %v368, 0
        %371 = vmatprep.subr.mxu0 0.0
        %372 = vmatpush1.msra.mxu0 %v229
        %373 = vmatprep.subr.mxu0 0.0
        %374 = vmatpush1.msra.mxu0 %v230
        %375 = vmatprep.subr.mxu0 0.0
        %376 = vmatpush1.msra.mxu0 %v231
        %377 = vmatprep.subr.mxu0 0.0
        %378 = vmatpush1.msra.mxu0 %v232
        %379 = vmatprep.subr.mxu0 0.0
        %380 = vmatpush1.msra.mxu0 0.0
        %381 = vmatprep.subr.mxu0 0.0
        %382 = vmatpush1.msra.mxu0 0.0
        %383 = vmatprep.subr.mxu0 0.0
        %384 = vmatpush1.msra.mxu0 0.0
        %385 = vmatprep.subr.mxu0 0.0
        %386 = vmatpush1.msra.mxu0 0.0
        %387 = vmatprep.subr.mxu0 0.0
        %388 = vmatpush1.msra.mxu0 0.0
        %389 = vmatprep.subr.mxu0 0.0
        %390 = vmatpush1.msra.mxu0 0.0
        %391 = vmatprep.subr.mxu0 0.0
        %392 = vmatpush1.msra.mxu0 0.0
        %393 = vmatprep.subr.mxu0 0.0
        %394 = vmatpush1.msra.mxu0 0.0
        %395 = vmatprep.subr.mxu0 0.0
        %396 = vmatpush1.msra.mxu0 0.0
        %397 = vmatprep.subr.mxu0 0.0
        %398 = vmatpush1.msra.mxu0 0.0
        %399 = vmatprep.subr.mxu0 0.0
        %400 = vmatpush1.msra.mxu0 0.0
        %401 = vmatprep.subr.mxu0 0.0
        %402 = vmatpush1.msra.mxu0 0.0
        %403 = vmatprep.subr.mxu0 0.0
        %404 = vmatpush1.msra.mxu0 0.0
        %405 = vmatprep.subr.mxu0 0.0
        %406 = vmatpush1.msra.mxu0 0.0
        %407 = vmatprep.subr.mxu0 0.0
        %408 = vmatpush1.msra.mxu0 0.0
        %409 = vmatprep.subr.mxu0 0.0
        %410 = vmatpush1.msra.mxu0 0.0
        %411 = vmatprep.subr.mxu0 0.0
        %412 = vmatpush1.msra.mxu0 0.0
        %413 = vmatprep.subr.mxu0 0.0
        %414 = vmatpush1.msra.mxu0 0.0
        %415 = vmatprep.subr.mxu0 0.0
        %416 = vmatpush1.msra.mxu0 0.0
        %417 = vmatprep.subr.mxu0 0.0
        %418 = vmatpush1.msra.mxu0 0.0
        %419 = vmatprep.subr.mxu0 0.0
        %420 = vmatpush1.msra.mxu0 0.0
        %421 = vmatprep.subr.mxu0 0.0
        %422 = vmatpush1.msra.mxu0 0.0
        %423 = vmatprep.subr.mxu0 0.0
        %424 = vmatpush1.msra.mxu0 0.0
        %425 = vmatprep.subr.mxu0 0.0
        %426 = vmatpush1.msra.mxu0 0.0
        %427 = vmatprep.subr.mxu0 0.0
        %428 = vmatpush1.msra.mxu0 0.0
        %429 = vmatprep.subr.mxu0 0.0
        %430 = vmatpush1.msra.mxu0 0.0
        %431 = vmatprep.subr.mxu0 0.0
        %432 = vmatpush1.msra.mxu0 0.0
        %433 = vmatprep.subr.mxu0 0.0
        %434 = vmatpush1.msra.mxu0 0.0
        %435 = vmatprep.mubr.f32.mxu0 0.0
        %436 = vmatmul.mubr.f32.gmra.mrb[0].mxu0 %v369
        %v437 = vpop.f32.mrb[0].mxu0
        %v438 = vadd.f32 0.0, %v437
        %v439 = vpop.f32.mrb[0].mxu0
        %440 = vdwg.mxu0
        %v441 = vadd.f32 %v365, %v438
        %s442 = scalar_lea.vmem %s1, %s363
        %v443 = vld [vmem:[%s442] sm:$0x3]
        %v444 = vxor.u32 %v441, 2147483648
        %v445 = vmul.f32 %v444, 1.442695
        %v446 = vpow.pop %v445
        %v447 = vadd.f32 %v446, 1.0
        %v448 = vrcp.pop %v447
        %v449 = vmul.f32 1.0, %v448
        %v450 = vtanh.pop %v441
        %v451 = vmul.f32 %v449, %v361
        %453 = vrot.lane.b32.xlu0 %v450, 64
        %v454 = vpop.permute.xlu0 %453
        %v456 = vmul.f32 %v449, %v454
        %458 = vrot.lane.b32.xlu0 %v456, 32
        %v459 = vpop.permute.xlu0 %458
        %v461 = vadd.f32 %v451, %v459
        %v462 = vtanh.pop %v461
        %464 = vrot.lane.b32.xlu0 %v462, 64
        %v465 = vpop.permute.xlu0 %464
        %v467 = vmul.f32 %v449, %v465
        %469 = vset.pattern.permute.xlu0 0
        %470 = vperm.xlu0 %469, %v443
        %v471 = vpop.permute.xlu0 %470
        %v473 = vmul.f32 %v471, %v467
        %475 = vrot.lane.b32.xlu0 %v473, 32
        %v476 = vpop.permute.xlu0 %475
        %s478 = scalar_lea.vmem %s228, %s363 [#allocation7]
        %479 = vst.msk [vmem:[%s478] sm:$0x3] %vm350, %v476
        %v480 = vsub.f32 1.0, %v443
        %482 = vset.pattern.permute.xlu0 0
        %483 = vperm.xlu0 %482, %v480
        %v484 = vpop.permute.xlu0 %483
        %v486 = vmul.f32 %v484, %v359
        %v487 = vadd.f32 %v473, %v486
        %v488 = vmul.f32 %v471, %v461
        %v489 = vmul.f32 %v484, %v361
        %v490 = vadd.f32 %v488, %v489
        %s491 = scalar_select %p233, 2, 5
        %s492 = smul.u32 %s491, 2
        %s493 = scalar_lea.vmem %s192, %s492 [#allocation2]
        %v494 = vld [vmem:[%s493] sm:$0x3]
        %496 = vrot.lane.b32.xlu0 %v487, 32
        %v497 = vpop.permute.xlu0 %496
        %v498 = vsel %vm238, %v497, 0
        %500 = vmatprep.subr.mxu0 0.0
        %501 = vmatpush1.msra.mxu0 %v229
        %502 = vmatprep.subr.mxu0 0.0
        %503 = vmatpush1.msra.mxu0 %v230
        %504 = vmatprep.subr.mxu0 0.0
        %505 = vmatpush1.msra.mxu0 %v231
        %506 = vmatprep.subr.mxu0 0.0
        %507 = vmatpush1.msra.mxu0 %v232
        %508 = vmatprep.subr.mxu0 0.0
        %509 = vmatpush1.msra.mxu0 0.0
        %510 = vmatprep.subr.mxu0 0.0
        %511 = vmatpush1.msra.mxu0 0.0
        %512 = vmatprep.subr.mxu0 0.0
        %513 = vmatpush1.msra.mxu0 0.0
        %514 = vmatprep.subr.mxu0 0.0
        %515 = vmatpush1.msra.mxu0 0.0
        %516 = vmatprep.subr.mxu0 0.0
        %517 = vmatpush1.msra.mxu0 0.0
        %518 = vmatprep.subr.mxu0 0.0
        %519 = vmatpush1.msra.mxu0 0.0
        %520 = vmatprep.subr.mxu0 0.0
        %521 = vmatpush1.msra.mxu0 0.0
        %522 = vmatprep.subr.mxu0 0.0
        %523 = vmatpush1.msra.mxu0 0.0
        %524 = vmatprep.subr.mxu0 0.0
        %525 = vmatpush1.msra.mxu0 0.0
        %526 = vmatprep.subr.mxu0 0.0
        %527 = vmatpush1.msra.mxu0 0.0
        %528 = vmatprep.subr.mxu0 0.0
        %529 = vmatpush1.msra.mxu0 0.0
        %530 = vmatprep.subr.mxu0 0.0
        %531 = vmatpush1.msra.mxu0 0.0
        %532 = vmatprep.subr.mxu0 0.0
        %533 = vmatpush1.msra.mxu0 0.0
        %534 = vmatprep.subr.mxu0 0.0
        %535 = vmatpush1.msra.mxu0 0.0
        %536 = vmatprep.subr.mxu0 0.0
        %537 = vmatpush1.msra.mxu0 0.0
        %538 = vmatprep.subr.mxu0 0.0
        %539 = vmatpush1.msra.mxu0 0.0
        %540 = vmatprep.subr.mxu0 0.0
        %541 = vmatpush1.msra.mxu0 0.0
        %542 = vmatprep.subr.mxu0 0.0
        %543 = vmatpush1.msra.mxu0 0.0
        %544 = vmatprep.subr.mxu0 0.0
        %545 = vmatpush1.msra.mxu0 0.0
        %546 = vmatprep.subr.mxu0 0.0
        %547 = vmatpush1.msra.mxu0 0.0
        %548 = vmatprep.subr.mxu0 0.0
        %549 = vmatpush1.msra.mxu0 0.0
        %550 = vmatprep.subr.mxu0 0.0
        %551 = vmatpush1.msra.mxu0 0.0
        %552 = vmatprep.subr.mxu0 0.0
        %553 = vmatpush1.msra.mxu0 0.0
        %554 = vmatprep.subr.mxu0 0.0
        %555 = vmatpush1.msra.mxu0 0.0
        %556 = vmatprep.subr.mxu0 0.0
        %557 = vmatpush1.msra.mxu0 0.0
        %558 = vmatprep.subr.mxu0 0.0
        %559 = vmatpush1.msra.mxu0 0.0
        %560 = vmatprep.subr.mxu0 0.0
        %561 = vmatpush1.msra.mxu0 0.0
        %562 = vmatprep.subr.mxu0 0.0
        %563 = vmatpush1.msra.mxu0 0.0
        %564 = vmatprep.mubr.f32.mxu0 0.0
        %565 = vmatmul.mubr.f32.gmra.mrb[0].mxu0 %v498
        %v566 = vpop.f32.mrb[0].mxu0
        %v567 = vadd.f32 0.0, %v566
        %v568 = vpop.f32.mrb[0].mxu0
        %569 = vdwg.mxu0
        %v570 = vadd.f32 %v494, %v567
        %s571 = scalar_lea.vmem %s1, %s492
        %v572 = vld [vmem:[%s571] sm:$0x3]
        %v573 = vxor.u32 %v570, 2147483648
        %v574 = vmul.f32 %v573, 1.442695
        %v575 = vpow.pop %v574
        %v576 = vadd.f32 %v575, 1.0
        %v577 = vrcp.pop %v576
        %v578 = vmul.f32 1.0, %v577
        %v579 = vtanh.pop %v570
        %v580 = vmul.f32 %v578, %v490
        %582 = vrot.lane.b32.xlu0 %v579, 64
        %v583 = vpop.permute.xlu0 %582
        %v585 = vmul.f32 %v578, %v583
        %587 = vrot.lane.b32.xlu0 %v585, 32
        %v588 = vpop.permute.xlu0 %587
        %v590 = vadd.f32 %v580, %v588
        %v591 = vtanh.pop %v590
        %593 = vrot.lane.b32.xlu0 %v591, 64
        %v594 = vpop.permute.xlu0 %593
        %v596 = vmul.f32 %v578, %v594
        %598 = vset.pattern.permute.xlu0 0
        %599 = vperm.xlu0 %598, %v572
        %v600 = vpop.permute.xlu0 %599
        %v602 = vmul.f32 %v600, %v596
        %604 = vrot.lane.b32.xlu0 %v602, 32
        %v605 = vpop.permute.xlu0 %604
        %s607 = scalar_lea.vmem %s228, %s492 [#allocation7]
        %608 = vst.msk [vmem:[%s607] sm:$0x3] %vm350, %v605
        %v609 = vsub.f32 1.0, %v572
        %611 = vset.pattern.permute.xlu0 0
        %612 = vperm.xlu0 %611, %v609
        %v613 = vpop.permute.xlu0 %612
        %v615 = vmul.f32 %v613, %v487
        %v616 = vadd.f32 %v602, %v615
        %v617 = vmul.f32 %v600, %v590
        %v618 = vmul.f32 %v613, %v490
        %v619 = vadd.f32 %v617, %v618
        %s620 = scalar_select %p233, 3, 4
        %s621 = smul.u32 %s620, 2
        %s622 = scalar_lea.vmem %s192, %s621 [#allocation2]
        %v623 = vld [vmem:[%s622] sm:$0x3]
        %625 = vrot.lane.b32.xlu0 %v616, 32
        %v626 = vpop.permute.xlu0 %625
        %v627 = vsel %vm238, %v626, 0
        %629 = vmatprep.subr.mxu0 0.0
        %630 = vmatpush1.msra.mxu0 %v229
        %631 = vmatprep.subr.mxu0 0.0
        %632 = vmatpush1.msra.mxu0 %v230
        %633 = vmatprep.subr.mxu0 0.0
        %634 = vmatpush1.msra.mxu0 %v231
        %635 = vmatprep.subr.mxu0 0.0
        %636 = vmatpush1.msra.mxu0 %v232
        %637 = vmatprep.subr.mxu0 0.0
        %638 = vmatpush1.msra.mxu0 0.0
        %639 = vmatprep.subr.mxu0 0.0
        %640 = vmatpush1.msra.mxu0 0.0
        %641 = vmatprep.subr.mxu0 0.0
        %642 = vmatpush1.msra.mxu0 0.0
        %643 = vmatprep.subr.mxu0 0.0
        %644 = vmatpush1.msra.mxu0 0.0
        %645 = vmatprep.subr.mxu0 0.0
        %646 = vmatpush1.msra.mxu0 0.0
        %647 = vmatprep.subr.mxu0 0.0
        %648 = vmatpush1.msra.mxu0 0.0
        %649 = vmatprep.subr.mxu0 0.0
        %650 = vmatpush1.msra.mxu0 0.0
        %651 = vmatprep.subr.mxu0 0.0
        %652 = vmatpush1.msra.mxu0 0.0
        %653 = vmatprep.subr.mxu0 0.0
        %654 = vmatpush1.msra.mxu0 0.0
        %655 = vmatprep.subr.mxu0 0.0
        %656 = vmatpush1.msra.mxu0 0.0
        %657 = vmatprep.subr.mxu0 0.0
        %658 = vmatpush1.msra.mxu0 0.0
        %659 = vmatprep.subr.mxu0 0.0
        %660 = vmatpush1.msra.mxu0 0.0
        %661 = vmatprep.subr.mxu0 0.0
        %662 = vmatpush1.msra.mxu0 0.0
        %663 = vmatprep.subr.mxu0 0.0
        %664 = vmatpush1.msra.mxu0 0.0
        %665 = vmatprep.subr.mxu0 0.0
        %666 = vmatpush1.msra.mxu0 0.0
        %667 = vmatprep.subr.mxu0 0.0
        %668 = vmatpush1.msra.mxu0 0.0
        %669 = vmatprep.subr.mxu0 0.0
        %670 = vmatpush1.msra.mxu0 0.0
        %671 = vmatprep.subr.mxu0 0.0
        %672 = vmatpush1.msra.mxu0 0.0
        %673 = vmatprep.subr.mxu0 0.0
        %674 = vmatpush1.msra.mxu0 0.0
        %675 = vmatprep.subr.mxu0 0.0
        %676 = vmatpush1.msra.mxu0 0.0
        %677 = vmatprep.subr.mxu0 0.0
        %678 = vmatpush1.msra.mxu0 0.0
        %679 = vmatprep.subr.mxu0 0.0
        %680 = vmatpush1.msra.mxu0 0.0
        %681 = vmatprep.subr.mxu0 0.0
        %682 = vmatpush1.msra.mxu0 0.0
        %683 = vmatprep.subr.mxu0 0.0
        %684 = vmatpush1.msra.mxu0 0.0
        %685 = vmatprep.subr.mxu0 0.0
        %686 = vmatpush1.msra.mxu0 0.0
        %687 = vmatprep.subr.mxu0 0.0
        %688 = vmatpush1.msra.mxu0 0.0
        %689 = vmatprep.subr.mxu0 0.0
        %690 = vmatpush1.msra.mxu0 0.0
        %691 = vmatprep.subr.mxu0 0.0
        %692 = vmatpush1.msra.mxu0 0.0
        %693 = vmatprep.mubr.f32.mxu0 0.0
        %694 = vmatmul.mubr.f32.gmra.mrb[0].mxu0 %v627
        %v695 = vpop.f32.mrb[0].mxu0
        %v696 = vadd.f32 0.0, %v695
        %v697 = vpop.f32.mrb[0].mxu0
        %698 = vdwg.mxu0
        %v699 = vadd.f32 %v623, %v696
        %s700 = scalar_lea.vmem %s1, %s621
        %v701 = vld [vmem:[%s700] sm:$0x3]
        %v702 = vxor.u32 %v699, 2147483648
        %v703 = vmul.f32 %v702, 1.442695
        %v704 = vpow.pop %v703
        %v705 = vadd.f32 %v704, 1.0
        %v706 = vrcp.pop %v705
        %v707 = vmul.f32 1.0, %v706
        %v708 = vtanh.pop %v699
        %v709 = vmul.f32 %v707, %v619
        %711 = vrot.lane.b32.xlu0 %v708, 64
        %v712 = vpop.permute.xlu0 %711
        %v714 = vmul.f32 %v707, %v712
        %716 = vrot.lane.b32.xlu0 %v714, 32
        %v717 = vpop.permute.xlu0 %716
        %v719 = vadd.f32 %v709, %v717
        %v720 = vtanh.pop %v719
        %722 = vrot.lane.b32.xlu0 %v720, 64
        %v723 = vpop.permute.xlu0 %722
        %v725 = vmul.f32 %v707, %v723
        %727 = vset.pattern.permute.xlu0 0
        %728 = vperm.xlu0 %727, %v701
        %v729 = vpop.permute.xlu0 %728
        %v731 = vmul.f32 %v729, %v725
        %733 = vrot.lane.b32.xlu0 %v731, 32
        %v734 = vpop.permute.xlu0 %733
        %s736 = scalar_lea.vmem %s228, %s621 [#allocation7]
        %737 = vst.msk [vmem:[%s736] sm:$0x3] %vm350, %v734
        %v738 = vsub.f32 1.0, %v701
        %740 = vset.pattern.permute.xlu0 0
        %741 = vperm.xlu0 %740, %v738
        %v742 = vpop.permute.xlu0 %741
        %v744 = vmul.f32 %v742, %v616
        %v745 = vadd.f32 %v731, %v744
        %v746 = vmul.f32 %v729, %v719
        %v747 = vmul.f32 %v742, %v619
        %v748 = vadd.f32 %v746, %v747
        %s749 = scalar_select %p233, 4, 3
        %s750 = smul.u32 %s749, 2
        %s751 = scalar_lea.vmem %s192, %s750 [#allocation2]
        %v752 = vld [vmem:[%s751] sm:$0x3]
        %754 = vrot.lane.b32.xlu0 %v745, 32
        %v755 = vpop.permute.xlu0 %754
        %v756 = vsel %vm238, %v755, 0
        %758 = vmatprep.subr.mxu0 0.0
        %759 = vmatpush1.msra.mxu0 %v229
        %760 = vmatprep.subr.mxu0 0.0
        %761 = vmatpush1.msra.mxu0 %v230
        %762 = vmatprep.subr.mxu0 0.0
        %763 = vmatpush1.msra.mxu0 %v231
        %764 = vmatprep.subr.mxu0 0.0
        %765 = vmatpush1.msra.mxu0 %v232
        %766 = vmatprep.subr.mxu0 0.0
        %767 = vmatpush1.msra.mxu0 0.0
        %768 = vmatprep.subr.mxu0 0.0
        %769 = vmatpush1.msra.mxu0 0.0
        %770 = vmatprep.subr.mxu0 0.0
        %771 = vmatpush1.msra.mxu0 0.0
        %772 = vmatprep.subr.mxu0 0.0
        %773 = vmatpush1.msra.mxu0 0.0
        %774 = vmatprep.subr.mxu0 0.0
        %775 = vmatpush1.msra.mxu0 0.0
        %776 = vmatprep.subr.mxu0 0.0
        %777 = vmatpush1.msra.mxu0 0.0
        %778 = vmatprep.subr.mxu0 0.0
        %779 = vmatpush1.msra.mxu0 0.0
        %780 = vmatprep.subr.mxu0 0.0
        %781 = vmatpush1.msra.mxu0 0.0
        %782 = vmatprep.subr.mxu0 0.0
        %783 = vmatpush1.msra.mxu0 0.0
        %784 = vmatprep.subr.mxu0 0.0
        %785 = vmatpush1.msra.mxu0 0.0
        %786 = vmatprep.subr.mxu0 0.0
        %787 = vmatpush1.msra.mxu0 0.0
        %788 = vmatprep.subr.mxu0 0.0
        %789 = vmatpush1.msra.mxu0 0.0
        %790 = vmatprep.subr.mxu0 0.0
        %791 = vmatpush1.msra.mxu0 0.0
        %792 = vmatprep.subr.mxu0 0.0
        %793 = vmatpush1.msra.mxu0 0.0
        %794 = vmatprep.subr.mxu0 0.0
        %795 = vmatpush1.msra.mxu0 0.0
        %796 = vmatprep.subr.mxu0 0.0
        %797 = vmatpush1.msra.mxu0 0.0
        %798 = vmatprep.subr.mxu0 0.0
        %799 = vmatpush1.msra.mxu0 0.0
        %800 = vmatprep.subr.mxu0 0.0
        %801 = vmatpush1.msra.mxu0 0.0
        %802 = vmatprep.subr.mxu0 0.0
        %803 = vmatpush1.msra.mxu0 0.0
        %804 = vmatprep.subr.mxu0 0.0
        %805 = vmatpush1.msra.mxu0 0.0
        %806 = vmatprep.subr.mxu0 0.0
        %807 = vmatpush1.msra.mxu0 0.0
        %808 = vmatprep.subr.mxu0 0.0
        %809 = vmatpush1.msra.mxu0 0.0
        %810 = vmatprep.subr.mxu0 0.0
        %811 = vmatpush1.msra.mxu0 0.0
        %812 = vmatprep.subr.mxu0 0.0
        %813 = vmatpush1.msra.mxu0 0.0
        %814 = vmatprep.subr.mxu0 0.0
        %815 = vmatpush1.msra.mxu0 0.0
        %816 = vmatprep.subr.mxu0 0.0
        %817 = vmatpush1.msra.mxu0 0.0
        %818 = vmatprep.subr.mxu0 0.0
        %819 = vmatpush1.msra.mxu0 0.0
        %820 = vmatprep.subr.mxu0 0.0
        %821 = vmatpush1.msra.mxu0 0.0
        %822 = vmatprep.mubr.f32.mxu0 0.0
        %823 = vmatmul.mubr.f32.gmra.mrb[0].mxu0 %v756
        %v824 = vpop.f32.mrb[0].mxu0
        %v825 = vadd.f32 0.0, %v824
        %v826 = vpop.f32.mrb[0].mxu0
        %827 = vdwg.mxu0
        %v828 = vadd.f32 %v752, %v825
        %s829 = scalar_lea.vmem %s1, %s750
        %v830 = vld [vmem:[%s829] sm:$0x3]
        %v831 = vxor.u32 %v828, 2147483648
        %v832 = vmul.f32 %v831, 1.442695
        %v833 = vpow.pop %v832
        %v834 = vadd.f32 %v833, 1.0
        %v835 = vrcp.pop %v834
        %v836 = vmul.f32 1.0, %v835
        %v837 = vtanh.pop %v828
        %v838 = vmul.f32 %v836, %v748
        %840 = vrot.lane.b32.xlu0 %v837, 64
        %v841 = vpop.permute.xlu0 %840
        %v843 = vmul.f32 %v836, %v841
        %845 = vrot.lane.b32.xlu0 %v843, 32
        %v846 = vpop.permute.xlu0 %845
        %v848 = vadd.f32 %v838, %v846
        %v849 = vtanh.pop %v848
        %851 = vrot.lane.b32.xlu0 %v849, 64
        %v852 = vpop.permute.xlu0 %851
        %v854 = vmul.f32 %v836, %v852
        %856 = vset.pattern.permute.xlu0 0
        %857 = vperm.xlu0 %856, %v830
        %v858 = vpop.permute.xlu0 %857
        %v860 = vmul.f32 %v858, %v854
        %862 = vrot.lane.b32.xlu0 %v860, 32
        %v863 = vpop.permute.xlu0 %862
        %s865 = scalar_lea.vmem %s228, %s750 [#allocation7]
        %866 = vst.msk [vmem:[%s865] sm:$0x3] %vm350, %v863
        %v867 = vsub.f32 1.0, %v830
        %869 = vset.pattern.permute.xlu0 0
        %870 = vperm.xlu0 %869, %v867
        %v871 = vpop.permute.xlu0 %870
        %v873 = vmul.f32 %v871, %v745
        %v874 = vadd.f32 %v860, %v873
        %v875 = vmul.f32 %v858, %v848
        %v876 = vmul.f32 %v871, %v748
        %v877 = vadd.f32 %v875, %v876
        %s878 = scalar_select %p233, 5, 2
        %s879 = smul.u32 %s878, 2
        %s880 = scalar_lea.vmem %s192, %s879 [#allocation2]
        %v881 = vld [vmem:[%s880] sm:$0x3]
        %883 = vrot.lane.b32.xlu0 %v874, 32
        %v884 = vpop.permute.xlu0 %883
        %v885 = vsel %vm238, %v884, 0
        %887 = vmatprep.subr.mxu0 0.0
        %888 = vmatpush1.msra.mxu0 %v229
        %889 = vmatprep.subr.mxu0 0.0
        %890 = vmatpush1.msra.mxu0 %v230
        %891 = vmatprep.subr.mxu0 0.0
        %892 = vmatpush1.msra.mxu0 %v231
        %893 = vmatprep.subr.mxu0 0.0
        %894 = vmatpush1.msra.mxu0 %v232
        %895 = vmatprep.subr.mxu0 0.0
        %896 = vmatpush1.msra.mxu0 0.0
        %897 = vmatprep.subr.mxu0 0.0
        %898 = vmatpush1.msra.mxu0 0.0
        %899 = vmatprep.subr.mxu0 0.0
        %900 = vmatpush1.msra.mxu0 0.0
        %901 = vmatprep.subr.mxu0 0.0
        %902 = vmatpush1.msra.mxu0 0.0
        %903 = vmatprep.subr.mxu0 0.0
        %904 = vmatpush1.msra.mxu0 0.0
        %905 = vmatprep.subr.mxu0 0.0
        %906 = vmatpush1.msra.mxu0 0.0
        %907 = vmatprep.subr.mxu0 0.0
        %908 = vmatpush1.msra.mxu0 0.0
        %909 = vmatprep.subr.mxu0 0.0
        %910 = vmatpush1.msra.mxu0 0.0
        %911 = vmatprep.subr.mxu0 0.0
        %912 = vmatpush1.msra.mxu0 0.0
        %913 = vmatprep.subr.mxu0 0.0
        %914 = vmatpush1.msra.mxu0 0.0
        %915 = vmatprep.subr.mxu0 0.0
        %916 = vmatpush1.msra.mxu0 0.0
        %917 = vmatprep.subr.mxu0 0.0
        %918 = vmatpush1.msra.mxu0 0.0
        %919 = vmatprep.subr.mxu0 0.0
        %920 = vmatpush1.msra.mxu0 0.0
        %921 = vmatprep.subr.mxu0 0.0
        %922 = vmatpush1.msra.mxu0 0.0
        %923 = vmatprep.subr.mxu0 0.0
        %924 = vmatpush1.msra.mxu0 0.0
        %925 = vmatprep.subr.mxu0 0.0
        %926 = vmatpush1.msra.mxu0 0.0
        %927 = vmatprep.subr.mxu0 0.0
        %928 = vmatpush1.msra.mxu0 0.0
        %929 = vmatprep.subr.mxu0 0.0
        %930 = vmatpush1.msra.mxu0 0.0
        %931 = vmatprep.subr.mxu0 0.0
        %932 = vmatpush1.msra.mxu0 0.0
        %933 = vmatprep.subr.mxu0 0.0
        %934 = vmatpush1.msra.mxu0 0.0
        %935 = vmatprep.subr.mxu0 0.0
        %936 = vmatpush1.msra.mxu0 0.0
        %937 = vmatprep.subr.mxu0 0.0
        %938 = vmatpush1.msra.mxu0 0.0
        %939 = vmatprep.subr.mxu0 0.0
        %940 = vmatpush1.msra.mxu0 0.0
        %941 = vmatprep.subr.mxu0 0.0
        %942 = vmatpush1.msra.mxu0 0.0
        %943 = vmatprep.subr.mxu0 0.0
        %944 = vmatpush1.msra.mxu0 0.0
        %945 = vmatprep.subr.mxu0 0.0
        %946 = vmatpush1.msra.mxu0 0.0
        %947 = vmatprep.subr.mxu0 0.0
        %948 = vmatpush1.msra.mxu0 0.0
        %949 = vmatprep.subr.mxu0 0.0
        %950 = vmatpush1.msra.mxu0 0.0
        %951 = vmatprep.mubr.f32.mxu0 0.0
        %952 = vmatmul.mubr.f32.gmra.mrb[0].mxu0 %v885
        %v953 = vpop.f32.mrb[0].mxu0
        %v954 = vadd.f32 0.0, %v953
        %v955 = vpop.f32.mrb[0].mxu0
        %956 = vdwg.mxu0
        %v957 = vadd.f32 %v881, %v954
        %s958 = scalar_lea.vmem %s1, %s879
        %v959 = vld [vmem:[%s958] sm:$0x3]
        %v960 = vxor.u32 %v957, 2147483648
        %v961 = vmul.f32 %v960, 1.442695
        %v962 = vpow.pop %v961
        %v963 = vadd.f32 %v962, 1.0
        %v964 = vrcp.pop %v963
        %v965 = vmul.f32 1.0, %v964
        %v966 = vtanh.pop %v957
        %v967 = vmul.f32 %v965, %v877
        %969 = vrot.lane.b32.xlu0 %v966, 64
        %v970 = vpop.permute.xlu0 %969
        %v972 = vmul.f32 %v965, %v970
        %974 = vrot.lane.b32.xlu0 %v972, 32
        %v975 = vpop.permute.xlu0 %974
        %v977 = vadd.f32 %v967, %v975
        %v978 = vtanh.pop %v977
        %980 = vrot.lane.b32.xlu0 %v978, 64
        %v981 = vpop.permute.xlu0 %980
        %v983 = vmul.f32 %v965, %v981
        %985 = vset.pattern.permute.xlu0 0
        %986 = vperm.xlu0 %985, %v959
        %v987 = vpop.permute.xlu0 %986
        %v989 = vmul.f32 %v987, %v983
        %991 = vrot.lane.b32.xlu0 %v989, 32
        %v992 = vpop.permute.xlu0 %991
        %s994 = scalar_lea.vmem %s228, %s879 [#allocation7]
        %995 = vst.msk [vmem:[%s994] sm:$0x3] %vm350, %v992
        %v996 = vsub.f32 1.0, %v959
        %998 = vset.pattern.permute.xlu0 0
        %999 = vperm.xlu0 %998, %v996
        %v1000 = vpop.permute.xlu0 %999
        %v1002 = vmul.f32 %v1000, %v874
        %v1003 = vadd.f32 %v989, %v1002
        %v1004 = vmul.f32 %v987, %v977
        %v1005 = vmul.f32 %v1000, %v877
        %v1006 = vadd.f32 %v1004, %v1005
        %s1007 = scalar_select %p233, 6, 1
        %s1008 = smul.u32 %s1007, 2
        %s1009 = scalar_lea.vmem %s192, %s1008 [#allocation2]
        %v1010 = vld [vmem:[%s1009] sm:$0x3]
        %1012 = vrot.lane.b32.xlu0 %v1003, 32
        %v1013 = vpop.permute.xlu0 %1012
        %v1014 = vsel %vm238, %v1013, 0
        %1016 = vmatprep.subr.mxu0 0.0
        %1017 = vmatpush1.msra.mxu0 %v229
        %1018 = vmatprep.subr.mxu0 0.0
        %1019 = vmatpush1.msra.mxu0 %v230
        %1020 = vmatprep.subr.mxu0 0.0
        %1021 = vmatpush1.msra.mxu0 %v231
        %1022 = vmatprep.subr.mxu0 0.0
        %1023 = vmatpush1.msra.mxu0 %v232
        %1024 = vmatprep.subr.mxu0 0.0
        %1025 = vmatpush1.msra.mxu0 0.0
        %1026 = vmatprep.subr.mxu0 0.0
        %1027 = vmatpush1.msra.mxu0 0.0
        %1028 = vmatprep.subr.mxu0 0.0
        %1029 = vmatpush1.msra.mxu0 0.0
        %1030 = vmatprep.subr.mxu0 0.0
        %1031 = vmatpush1.msra.mxu0 0.0
        %1032 = vmatprep.subr.mxu0 0.0
        %1033 = vmatpush1.msra.mxu0 0.0
        %1034 = vmatprep.subr.mxu0 0.0
        %1035 = vmatpush1.msra.mxu0 0.0
        %1036 = vmatprep.subr.mxu0 0.0
        %1037 = vmatpush1.msra.mxu0 0.0
        %1038 = vmatprep.subr.mxu0 0.0
        %1039 = vmatpush1.msra.mxu0 0.0
        %1040 = vmatprep.subr.mxu0 0.0
        %1041 = vmatpush1.msra.mxu0 0.0
        %1042 = vmatprep.subr.mxu0 0.0
        %1043 = vmatpush1.msra.mxu0 0.0
        %1044 = vmatprep.subr.mxu0 0.0
        %1045 = vmatpush1.msra.mxu0 0.0
        %1046 = vmatprep.subr.mxu0 0.0
        %1047 = vmatpush1.msra.mxu0 0.0
        %1048 = vmatprep.subr.mxu0 0.0
        %1049 = vmatpush1.msra.mxu0 0.0
        %1050 = vmatprep.subr.mxu0 0.0
        %1051 = vmatpush1.msra.mxu0 0.0
        %1052 = vmatprep.subr.mxu0 0.0
        %1053 = vmatpush1.msra.mxu0 0.0
        %1054 = vmatprep.subr.mxu0 0.0
        %1055 = vmatpush1.msra.mxu0 0.0
        %1056 = vmatprep.subr.mxu0 0.0
        %1057 = vmatpush1.msra.mxu0 0.0
        %1058 = vmatprep.subr.mxu0 0.0
        %1059 = vmatpush1.msra.mxu0 0.0
        %1060 = vmatprep.subr.mxu0 0.0
        %1061 = vmatpush1.msra.mxu0 0.0
        %1062 = vmatprep.subr.mxu0 0.0
        %1063 = vmatpush1.msra.mxu0 0.0
        %1064 = vmatprep.subr.mxu0 0.0
        %1065 = vmatpush1.msra.mxu0 0.0
        %1066 = vmatprep.subr.mxu0 0.0
        %1067 = vmatpush1.msra.mxu0 0.0
        %1068 = vmatprep.subr.mxu0 0.0
        %1069 = vmatpush1.msra.mxu0 0.0
        %1070 = vmatprep.subr.mxu0 0.0
        %1071 = vmatpush1.msra.mxu0 0.0
        %1072 = vmatprep.subr.mxu0 0.0
        %1073 = vmatpush1.msra.mxu0 0.0
        %1074 = vmatprep.subr.mxu0 0.0
        %1075 = vmatpush1.msra.mxu0 0.0
        %1076 = vmatprep.subr.mxu0 0.0
        %1077 = vmatpush1.msra.mxu0 0.0
        %1078 = vmatprep.subr.mxu0 0.0
        %1079 = vmatpush1.msra.mxu0 0.0
        %1080 = vmatprep.mubr.f32.mxu0 0.0
        %1081 = vmatmul.mubr.f32.gmra.mrb[0].mxu0 %v1014
        %v1082 = vpop.f32.mrb[0].mxu0
        %v1083 = vadd.f32 0.0, %v1082
        %v1084 = vpop.f32.mrb[0].mxu0
        %1085 = vdwg.mxu0
        %v1086 = vadd.f32 %v1010, %v1083
        %s1087 = scalar_lea.vmem %s1, %s1008
        %v1088 = vld [vmem:[%s1087] sm:$0x3]
        %v1089 = vxor.u32 %v1086, 2147483648
        %v1090 = vmul.f32 %v1089, 1.442695
        %v1091 = vpow.pop %v1090
        %v1092 = vadd.f32 %v1091, 1.0
        %v1093 = vrcp.pop %v1092
        %v1094 = vmul.f32 1.0, %v1093
        %v1095 = vtanh.pop %v1086
        %v1096 = vmul.f32 %v1094, %v1006
        %1098 = vrot.lane.b32.xlu0 %v1095, 64
        %v1099 = vpop.permute.xlu0 %1098
        %v1101 = vmul.f32 %v1094, %v1099
        %1103 = vrot.lane.b32.xlu0 %v1101, 32
        %v1104 = vpop.permute.xlu0 %1103
        %v1106 = vadd.f32 %v1096, %v1104
        %v1107 = vtanh.pop %v1106
        %1109 = vrot.lane.b32.xlu0 %v1107, 64
        %v1110 = vpop.permute.xlu0 %1109
        %v1112 = vmul.f32 %v1094, %v1110
        %1114 = vset.pattern.permute.xlu0 0
        %1115 = vperm.xlu0 %1114, %v1088
        %v1116 = vpop.permute.xlu0 %1115
        %v1118 = vmul.f32 %v1116, %v1112
        %1120 = vrot.lane.b32.xlu0 %v1118, 32
        %v1121 = vpop.permute.xlu0 %1120
        %s1123 = scalar_lea.vmem %s228, %s1008 [#allocation7]
        %1124 = vst.msk [vmem:[%s1123] sm:$0x3] %vm350, %v1121
        %v1125 = vsub.f32 1.0, %v1088
        %1127 = vset.pattern.permute.xlu0 0
        %1128 = vperm.xlu0 %1127, %v1125
        %v1129 = vpop.permute.xlu0 %1128
        %v1131 = vmul.f32 %v1129, %v1003
        %v1132 = vadd.f32 %v1118, %v1131
        %v1133 = vmul.f32 %v1116, %v1106
        %v1134 = vmul.f32 %v1129, %v1006
        %v1135 = vadd.f32 %v1133, %v1134
        %s1136 = scalar_select %p233, 7, 0
        %s1137 = smul.u32 %s1136, 2
        %s1138 = scalar_lea.vmem %s192, %s1137 [#allocation2]
        %v1139 = vld [vmem:[%s1138] sm:$0x3]
        %1141 = vrot.lane.b32.xlu0 %v1132, 32
        %v1142 = vpop.permute.xlu0 %1141
        %v1143 = vsel %vm238, %v1142, 0
        %1145 = vmatprep.subr.mxu0 0.0
        %1146 = vmatpush1.msra.mxu0 %v229
        %1147 = vmatprep.subr.mxu0 0.0
        %1148 = vmatpush1.msra.mxu0 %v230
        %1149 = vmatprep.subr.mxu0 0.0
        %1150 = vmatpush1.msra.mxu0 %v231
        %1151 = vmatprep.subr.mxu0 0.0
        %1152 = vmatpush1.msra.mxu0 %v232
        %1153 = vmatprep.subr.mxu0 0.0
        %1154 = vmatpush1.msra.mxu0 0.0
        %1155 = vmatprep.subr.mxu0 0.0
        %1156 = vmatpush1.msra.mxu0 0.0
        %1157 = vmatprep.subr.mxu0 0.0
        %1158 = vmatpush1.msra.mxu0 0.0
        %1159 = vmatprep.subr.mxu0 0.0
        %1160 = vmatpush1.msra.mxu0 0.0
        %1161 = vmatprep.subr.mxu0 0.0
        %1162 = vmatpush1.msra.mxu0 0.0
        %1163 = vmatprep.subr.mxu0 0.0
        %1164 = vmatpush1.msra.mxu0 0.0
        %1165 = vmatprep.subr.mxu0 0.0
        %1166 = vmatpush1.msra.mxu0 0.0
        %1167 = vmatprep.subr.mxu0 0.0
        %1168 = vmatpush1.msra.mxu0 0.0
        %1169 = vmatprep.subr.mxu0 0.0
        %1170 = vmatpush1.msra.mxu0 0.0
        %1171 = vmatprep.subr.mxu0 0.0
        %1172 = vmatpush1.msra.mxu0 0.0
        %1173 = vmatprep.subr.mxu0 0.0
        %1174 = vmatpush1.msra.mxu0 0.0
        %1175 = vmatprep.subr.mxu0 0.0
        %1176 = vmatpush1.msra.mxu0 0.0
        %1177 = vmatprep.subr.mxu0 0.0
        %1178 = vmatpush1.msra.mxu0 0.0
        %1179 = vmatprep.subr.mxu0 0.0
        %1180 = vmatpush1.msra.mxu0 0.0
        %1181 = vmatprep.subr.mxu0 0.0
        %1182 = vmatpush1.msra.mxu0 0.0
        %1183 = vmatprep.subr.mxu0 0.0
        %1184 = vmatpush1.msra.mxu0 0.0
        %1185 = vmatprep.subr.mxu0 0.0
        %1186 = vmatpush1.msra.mxu0 0.0
        %1187 = vmatprep.subr.mxu0 0.0
        %1188 = vmatpush1.msra.mxu0 0.0
        %1189 = vmatprep.subr.mxu0 0.0
        %1190 = vmatpush1.msra.mxu0 0.0
        %1191 = vmatprep.subr.mxu0 0.0
        %1192 = vmatpush1.msra.mxu0 0.0
        %1193 = vmatprep.subr.mxu0 0.0
        %1194 = vmatpush1.msra.mxu0 0.0
        %1195 = vmatprep.subr.mxu0 0.0
        %1196 = vmatpush1.msra.mxu0 0.0
        %1197 = vmatprep.subr.mxu0 0.0
        %1198 = vmatpush1.msra.mxu0 0.0
        %1199 = vmatprep.subr.mxu0 0.0
        %1200 = vmatpush1.msra.mxu0 0.0
        %1201 = vmatprep.subr.mxu0 0.0
        %1202 = vmatpush1.msra.mxu0 0.0
        %1203 = vmatprep.subr.mxu0 0.0
        %1204 = vmatpush1.msra.mxu0 0.0
        %1205 = vmatprep.subr.mxu0 0.0
        %1206 = vmatpush1.msra.mxu0 0.0
        %1207 = vmatprep.subr.mxu0 0.0
        %1208 = vmatpush1.msra.mxu0 0.0
        %1209 = vmatprep.mubr.f32.mxu0 0.0
        %1210 = vmatmul.mubr.f32.gmra.mrb[0].mxu0 %v1143
        %v1211 = vpop.f32.mrb[0].mxu0
        %v1212 = vadd.f32 0.0, %v1211
        %v1213 = vpop.f32.mrb[0].mxu0
        %1214 = vdwg.mxu0
        %v1215 = vadd.f32 %v1139, %v1212
        %s1216 = scalar_lea.vmem %s1, %s1137
        %v1217 = vld [vmem:[%s1216] sm:$0x3]
        %v1218 = vxor.u32 %v1215, 2147483648
        %v1219 = vmul.f32 %v1218, 1.442695
        %v1220 = vpow.pop %v1219
        %v1221 = vadd.f32 %v1220, 1.0
        %v1222 = vrcp.pop %v1221
        %v1223 = vmul.f32 1.0, %v1222
        %v1224 = vtanh.pop %v1215
        %v1225 = vmul.f32 %v1223, %v1135
        %1227 = vrot.lane.b32.xlu0 %v1224, 64
        %v1228 = vpop.permute.xlu0 %1227
        %v1230 = vmul.f32 %v1223, %v1228
        %1232 = vrot.lane.b32.xlu0 %v1230, 32
        %v1233 = vpop.permute.xlu0 %1232
        %v1235 = vadd.f32 %v1225, %v1233
        %v1236 = vtanh.pop %v1235
        %1238 = vrot.lane.b32.xlu0 %v1236, 64
        %v1239 = vpop.permute.xlu0 %1238
        %v1241 = vmul.f32 %v1223, %v1239
        %1243 = vset.pattern.permute.xlu0 0
        %1244 = vperm.xlu0 %1243, %v1217
        %v1245 = vpop.permute.xlu0 %1244
        %v1247 = vmul.f32 %v1245, %v1241
        %1249 = vrot.lane.b32.xlu0 %v1247, 32
        %v1250 = vpop.permute.xlu0 %1249
        %s1252 = scalar_lea.vmem %s228, %s1137 [#allocation7]
        %1253 = vst.msk [vmem:[%s1252] sm:$0x3] %vm350, %v1250
        %s1254 = sand.u32 %s104, 1
        %s1255 = scalar_lea.sflag [#allocation4], %s1254
        %s1256 = sand.u32 %s104, 1
        %s1257 = smul.addr %s1256, 16
        %s1258 = scalar_lea.vmem [#allocation7], %s1257
        // Predicated region
        $region41: #{tpu_custom_call.1} parent=31 // pred_check
          %p1259 = pneg %p114
        $region42: #{tpu_custom_call.1} parent=31 // pred_check_branch
          %1261 = sbr.rel (%p1259) target = $region44
        $region43: #{tpu_custom_call.1} parent=31 // pred_region
          %s1263 = ssub.s32 256, 256
          %1264 = vsyncadd %s1255, %s1263
          %s1265 = smul.addr %s23, 8
          %s1266 = smul.addr %s1265, 32
          %s1267 = scalar_lea.hbm %s3, %s1266
          %s1268 = sshll.u32 %s1258, 4
          %s1269 = int_to_ptr.vmem [resolvable:$true] %s1268
          %1274 = dma.vmem_to_hbm [thread:$0]  %s1269, 256, %s1267, %s1255, 32, 32, 2
        $region44: #{tpu_custom_call.1} parent=31 // pred_fallthru
          _
      $region32: #{tpu_custom_call.1} parent=5 // pred_fallthru
        _
      %p1275 = scmp.le.s32.totalorder 2, %s18
      // Predicated region
      $region45: #{tpu_custom_call.1} parent=5 // pred_check
        %p1276 = pneg %p1275
      $region46: #{tpu_custom_call.1} parent=5 // pred_check_branch
        %1278 = sbr.rel (%p1276) target = $region48
      $region47: #{tpu_custom_call.1} parent=5 // pred_region
        %s1279 = ssub.s32 %s18, 2
        // Predicated region
        $region49: #{tpu_custom_call.1} parent=47 // pred_check
          %p1280 = pneg %p120
        $region50: #{tpu_custom_call.1} parent=47 // pred_check_branch
          %1282 = sbr.rel (%p1280) target = $region52
        $region51: #{tpu_custom_call.1} parent=47 // pred_region
          %s1283 = sand.u32 %s105, 1
          %s1284 = scalar_lea.sflag [#allocation4], %s1283
          %s1285 = sand.u32 %s105, 1
          %s1286 = smul.addr %s1285, 16
          %s1287 = scalar_lea.vmem [#allocation7], %s1286
          %1288 = dma.done %s1284, 256
        $region52: #{tpu_custom_call.1} parent=47 // pred_fallthru
          _
      $region48: #{tpu_custom_call.1} parent=5 // pred_fallthru
        _
    $region6: #{tpu_custom_call.1} parent=1 // loop_footer
      %s22 = sadd.s32 1, %s18
    $region7: #{tpu_custom_call.1} parent=1 // loop_footer_branch
      %17 = sbr.rel target = $region3
    $region8: #{tpu_custom_call.1} parent=1 // loop_exit
      _
    %1289 = vsyncpa [#allocation3], 1
    %s1290 = scalar_lea.sflag [#allocation3], 1
    %1291 = vsyncpa %s1290, 1
    %1292 = vsyncpa [#allocation6], 1
    %s1293 = scalar_lea.sflag [#allocation6], 1
    %1294 = vsyncpa %s1293, 1
    %1295 = vsyncpa [#allocation4], 1
    %s1296 = scalar_lea.sflag [#allocation4], 1
    %1297 = vsyncpa %s1296, 1

</llo_original>
